<compile_context>
chip_gen: v5e
topology: v5e:2x2
jax: 0.10.0
libtpu: 0.0.40
codegen_flags: <defaults>
</compile_context>

<pallas_src>
import functools

import jax
import jax.numpy as jnp
from jax.experimental import pallas as pl
from jax.experimental.pallas import tpu as pltpu

THRESHOLD = 1.0


def snn_kernel(x_ref, w1_ref, b1_ref, w2_ref, b2_ref,
               spk1_ref, spk2_ref, mem2_ref,
               mem1_sc, mem2_sc, cur1_sc, cur2_sc, *, beta, tt, bt):
    t_blk = pl.program_id(1)

    @pl.when(t_blk == 0)
    def _():
        # snn.Leaky.init_leaky() -> zero membrane potential (per batch tile).
        mem1_sc[...] = jnp.zeros_like(mem1_sc)
        mem2_sc[...] = jnp.zeros_like(mem2_sc)

    # ---- fc1 hoisted out of the recurrence: ONE large-M bf16 MXU GEMM per block ----
    # x_ref is (tt*bt, I_pad); rows [t*bt, (t+1)*bt) belong to local timestep t.
    cur1_sc[...] = (
        jnp.dot(x_ref[...], w1_ref[...], preferred_element_type=jnp.float32)
        + b1_ref[...]
    )

    # ---- LIF1: sequential over time, VPU-only on the critical path ----
    # spk1 rows overwrite the consumed cur1 rows (f32, 8-row-aligned dynamic stores).
    def lif1_step(t, carry):
        r0 = pl.multiple_of(t * bt, bt)
        cur1 = cur1_sc[pl.ds(r0, bt), :]
        mem1_old = mem1_sc[...]
        reset1 = (mem1_old > THRESHOLD).astype(jnp.float32)
        mem1 = beta * mem1_old + cur1 - reset1 * THRESHOLD
        mem1_sc[...] = mem1
        cur1_sc[pl.ds(r0, bt), :] = (mem1 > THRESHOLD).astype(jnp.float32)
        return carry

    jax.lax.fori_loop(0, tt, lif1_step, 0, unroll=min(tt, 4))

    # Spike record (bf16 is exact for 0/1) and fc2 hoisted: ONE large-M bf16 GEMM.
    spk1_bf = cur1_sc[...].astype(jnp.bfloat16)
    spk1_ref[...] = spk1_bf                       # full-block, lane-dense store
    cur2_sc[...] = (
        jnp.dot(spk1_bf, w2_ref[...], preferred_element_type=jnp.float32)
        + b2_ref[...]
    )

    # ---- LIF2: sequential over time ----
    def lif2_step(t, carry):
        r0 = pl.multiple_of(t * bt, bt)
        cur2 = cur2_sc[pl.ds(r0, bt), :]
        mem2_old = mem2_sc[...]
        reset2 = (mem2_old > THRESHOLD).astype(jnp.float32)
        mem2 = beta * mem2_old + cur2 - reset2 * THRESHOLD
        mem2_sc[...] = mem2
        mem2_ref[pl.ds(r0, bt), :] = mem2
        cur2_sc[pl.ds(r0, bt), :] = (mem2 > THRESHOLD).astype(jnp.float32)
        return carry

    jax.lax.fori_loop(0, tt, lif2_step, 0, unroll=min(tt, 4))

    spk2_ref[...] = cur2_sc[...].astype(jnp.bfloat16)


def _round_up(v, m):
    return ((v + m - 1) // m) * m


def _vmem_bytes(tt, bt, i_pad, h_pad, o_pad):
    """Rough per-grid-step VMEM footprint (double-buffered blocks + scratch + weights)."""
    mt = tt * bt
    x_blk = mt * i_pad * 2 * 2          # bf16 input block, 2 pipeline buffers
    spk1_out = mt * h_pad * 2 * 2       # bf16 out block, 2 buffers
    spk2_out = mt * o_pad * 2 * 2
    mem2_out = mt * o_pad * 4 * 2
    cur1 = mt * h_pad * 4               # f32 staging scratch
    cur2 = mt * o_pad * 4
    spk1_tmp = mt * h_pad * 2           # bf16 intermediate feeding the fc2 GEMM
    weights = (i_pad * h_pad + h_pad * o_pad) * 2 * 2 + (h_pad + o_pad) * 4 * 2
    mems = bt * (h_pad + o_pad) * 4
    return x_blk + spk1_out + spk2_out + mem2_out + cur1 + cur2 + spk1_tmp + weights + mems


def _auto_time_block(bt, i_pad, h_pad, o_pad, budget=40 << 20):
    for cand in (128, 96, 64, 48, 32, 24, 16, 8, 4, 2, 1):
        if _vmem_bytes(cand, bt, i_pad, h_pad, o_pad) <= budget:
            return cand
    return 1


def snn_forward(x, w1, b1, w2, b2, *, beta=0.99, time_block=None, batch_block=None):
    """x: (T, B, I); w1: (I, H); b1: (1, H) or (H,); w2: (H, O); b2: (1, O) or (O,)."""
    T, B, I = x.shape
    H = w1.shape[1]
    O = w2.shape[1]
    f32 = jnp.float32
    bf16 = jnp.bfloat16

    # ---- padding: batch to sublanes, all feature axes (incl. K) to full lanes ----
    B_pad = _round_up(max(B, 8), 8)
    I_pad = _round_up(I, 128)
    H_pad = _round_up(H, 128)
    O_pad = _round_up(O, 128)

    # ---- batch tiling (leading "parallel" grid axis; feeds v7x's 2nd TensorCore) ----
    if batch_block is None:
        if B_pad >= 16 and (B_pad // 2) % 8 == 0:
            batch_block = B_pad // 2
        else:
            batch_block = B_pad
    bt = int(batch_block)
    assert B_pad % bt == 0 and bt % 8 == 0
    n_btiles = B_pad // bt

    # ---- time blocking: VMEM-budget-aware, no T % tt requirement (tail is padded) ----
    if time_block is None:
        time_block = _auto_time_block(bt, I_pad, H_pad, O_pad)
    tt = max(1, min(int(time_block), T))
    n_tblocks = -(-T // tt)
    tt = -(-T // n_tblocks)          # rebalance to minimize tail padding
    if tt % 2:                       # keep mt a multiple of 16 (bf16 sublane packing)
        tt += 1
    T_pad = n_tblocks * tt
    mt = tt * bt                     # rows per grid step = M of the hoisted GEMMs

    est = _vmem_bytes(tt, bt, I_pad, H_pad, O_pad)
    vmem_limit = int(min(max(est + (8 << 20), 32 << 20), 56 << 20))

    # ---- wrapper-side padding / layout plumbing (not compute) ----
    # Row layout: (batch_tile, time, row_in_tile) so each grid step gets a contiguous
    # (mt, I_pad) lane-dense slab.
    x_p = jnp.zeros((T_pad, B_pad, I_pad), bf16).at[:T, :B, :I].set(x.astype(bf16))
    x2 = (x_p.reshape(T_pad, n_btiles, bt, I_pad)
              .transpose(1, 0, 2, 3)
              .reshape(n_btiles * T_pad * bt, I_pad))

    w1_p = jnp.zeros((I_pad, H_pad), bf16).at[:I, :H].set(w1.astype(bf16))
    b1_p = jnp.zeros((1, H_pad), f32).at[:, :H].set(b1.reshape(1, H).astype(f32))
    w2_p = jnp.zeros((H_pad, O_pad), bf16).at[:H, :O].set(w2.astype(bf16))
    b2_p = jnp.zeros((1, O_pad), f32).at[:, :O].set(b2.reshape(1, O).astype(f32))

    row_block = lambda b, t: (b * n_tblocks + t, 0)
    const_block = lambda b, t: (0, 0)

    grid_spec = pltpu.PrefetchScalarGridSpec(
        num_scalar_prefetch=0,
        grid=(n_btiles, n_tblocks),
        in_specs=[
            pl.BlockSpec((mt, I_pad), row_block),          # x rows for this block
            pl.BlockSpec((I_pad, H_pad), const_block),     # W1 (bf16, VMEM-resident)
            pl.BlockSpec((1, H_pad), const_block),         # b1
            pl.BlockSpec((H_pad, O_pad), const_block),     # W2 (bf16, VMEM-resident)
            pl.BlockSpec((1, O_pad), const_block),         # b2
        ],
        out_specs=[
            pl.BlockSpec((mt, H_pad), row_block),          # spk1_rec (bf16)
            pl.BlockSpec((mt, O_pad), row_block),          # spk2_rec (bf16)
            pl.BlockSpec((mt, O_pad), row_block),          # mem2_rec (f32)
        ],
        scratch_shapes=[
            pltpu.VMEM((bt, H_pad), f32),                  # mem1 carry
            pltpu.VMEM((bt, O_pad), f32),                  # mem2 carry
            pltpu.VMEM((mt, H_pad), f32),                  # cur1 / spk1 staging
            pltpu.VMEM((mt, O_pad), f32),                  # cur2 / spk2 staging
        ],
    )

    spk1_p, spk2_p, mem2_p = pl.pallas_call(
        functools.partial(snn_kernel, beta=float(beta), tt=tt, bt=bt),
        grid_spec=grid_spec,
        out_shape=(
            jax.ShapeDtypeStruct((n_btiles * T_pad * bt, H_pad), bf16),
            jax.ShapeDtypeStruct((n_btiles * T_pad * bt, O_pad), bf16),
            jax.ShapeDtypeStruct((n_btiles * T_pad * bt, O_pad), f32),
        ),
        compiler_params=pltpu.CompilerParams(
            # Batch tiles are independent -> parallel; time carries membrane state ->
            # must stay sequential ("arbitrary").
            dimension_semantics=("parallel", "arbitrary"),
            vmem_limit_bytes=vmem_limit,
        ),
    )(x2, w1_p, b1_p, w2_p, b2_p)

    def unpack(a, feat, feat_pad):
        a = (a.reshape(n_btiles, T_pad, bt, feat_pad)
               .transpose(1, 0, 2, 3)
               .reshape(T_pad, B_pad, feat_pad))
        return a[:T, :B, :feat].astype(f32)

    spk1_rec = unpack(spk1_p, H, H_pad)
    spk2_rec = unpack(spk2_p, O, O_pad)
    mem2_rec = unpack(mem2_p, O, O_pad)
    return spk1_rec, spk2_rec, mem2_rec


def snn_reference(x, w1, b1, w2, b2, *, beta=0.99):
    """Pure-JAX reference at matching precision (bf16 matmul inputs, f32 accumulation)."""
    T, B, I = x.shape
    H = w1.shape[1]
    O = w2.shape[1]
    w1b = w1.astype(jnp.bfloat16)
    w2b = w2.astype(jnp.bfloat16)
    b1r = b1.reshape(1, H).astype(jnp.float32)
    b2r = b2.reshape(1, O).astype(jnp.float32)

    def step(carry, x_t):
        mem1, mem2 = carry
        cur1 = jnp.dot(x_t.astype(jnp.bfloat16), w1b,
                       preferred_element_type=jnp.float32) + b1r
        r1 = (mem1 > THRESHOLD).astype(jnp.float32)
        mem1 = beta * mem1 + cur1 - r1 * THRESHOLD
        spk1 = (mem1 > THRESHOLD).astype(jnp.float32)
        cur2 = jnp.dot(spk1.astype(jnp.bfloat16), w2b,
                       preferred_element_type=jnp.float32) + b2r
        r2 = (mem2 > THRESHOLD).astype(jnp.float32)
        mem2 = beta * mem2 + cur2 - r2 * THRESHOLD
        spk2 = (mem2 > THRESHOLD).astype(jnp.float32)
        return (mem1, mem2), (spk1, spk2, mem2)

    init = (jnp.zeros((B, H), jnp.float32), jnp.zeros((B, O), jnp.float32))
    _, (spk1_rec, spk2_rec, mem2_rec) = jax.lax.scan(step, init, x.astype(jnp.float32))
    return spk1_rec, spk2_rec, mem2_rec


if __name__ == "__main__":
    # Small shapes consistent with the module's forward (time-major spike trains).
    # (Tutorial: num_steps=200, batch=1, 784 -> 1000 -> 10.)
    T, B = 10, 2
    I, H, O = 256, 128, 10
    beta = 0.99

    key = jax.random.PRNGKey(0)
    k_x, k_w1, k_b1, k_w2, k_b2 = jax.random.split(key, 5)

    # Rate-coded Bernoulli spike input (spikegen.rate_conv(torch.rand(...)) analogue).
    spk_in = (jax.random.uniform(k_x, (T, B, I)) < 0.5).astype(jnp.float32)

    # Deterministic nn.Linear-style init: U(-1/sqrt(fan_in), 1/sqrt(fan_in)),
    # stored pre-transposed as (in_features, out_features).
    bnd1 = 1.0 / jnp.sqrt(I)
    w1 = jax.random.uniform(k_w1, (I, H), jnp.float32, -bnd1, bnd1)
    b1 = jax.random.uniform(k_b1, (1, H), jnp.float32, -bnd1, bnd1)
    bnd2 = 1.0 / jnp.sqrt(H)
    w2 = jax.random.uniform(k_w2, (H, O), jnp.float32, -bnd2, bnd2)
    b2 = jax.random.uniform(k_b2, (1, O), jnp.float32, -bnd2, bnd2)

    # time_block=4 with T=10 -> T padded to 12, grid=(1, 3): exercises the membrane
    # carry across grid steps and the zero-padded tail time block.
    spk1_rec, spk2_rec, mem2_rec = snn_forward(
        spk_in, w1, b1, w2, b2, beta=beta, time_block=4)
    jax.block_until_ready((spk1_rec, spk2_rec, mem2_rec))

    # Verify against a pure-JAX reference at matching (bf16-matmul) precision.
    r_spk1, r_spk2, r_mem2 = snn_reference(spk_in, w1, b1, w2, b2, beta=beta)
    assert spk1_rec.shape == r_spk1.shape
    assert spk2_rec.shape == r_spk2.shape
    assert mem2_rec.shape == r_mem2.shape
    # Spike comparison is tolerant to (rare) threshold-boundary flips from accumulation
    # order; membrane trajectory checked with tolerance.
    assert float(jnp.mean(jnp.abs(spk1_rec - r_spk1))) < 1e-3
    assert float(jnp.mean(jnp.abs(spk2_rec - r_spk2))) < 1e-3
    assert bool(jnp.allclose(mem2_rec, r_mem2, atol=2e-3, rtol=0.0))

    print("KERNEL_OK")
</pallas_src>

<mosaic_0001>
module attributes {stable_mosaic.version = 11 : i64} {
  func.func @snn_kernel(%arg0: i32, %arg1: i32, %arg2: memref<32x256xbf16, #tpu.memory_space<vmem>>, %arg3: memref<256x128xbf16, #tpu.memory_space<vmem>>, %arg4: memref<1x128xf32, #tpu.memory_space<vmem>>, %arg5: memref<128x128xbf16, #tpu.memory_space<vmem>>, %arg6: memref<1x128xf32, #tpu.memory_space<vmem>>, %arg7: memref<32x128xbf16, #tpu.memory_space<vmem>>, %arg8: memref<32x128xbf16, #tpu.memory_space<vmem>>, %arg9: memref<32x128xf32, #tpu.memory_space<vmem>>, %arg10: memref<8x128xf32, #tpu.memory_space<vmem>>, %arg11: memref<8x128xf32, #tpu.memory_space<vmem>>, %arg12: memref<32x128xf32, #tpu.memory_space<vmem>>, %arg13: memref<32x128xf32, #tpu.memory_space<vmem>>) attributes {dimension_semantics = [#tpu.dimension_semantics<parallel>, #tpu.dimension_semantics<arbitrary>], iteration_bounds = array<i64: 1, 3>, scalar_prefetch = 0 : i64, scratch_operands = 4 : i64, tpu.core_type = #tpu.core_type<tc>, window_params = [{transform_indices = @transform_0, window_bounds = array<i64: 32, 256>}, {pipeline_mode = #tpu.pipeline_mode<synchronous>, transform_indices = @transform_1, window_bounds = array<i64: 256, 128>}, {pipeline_mode = #tpu.pipeline_mode<synchronous>, transform_indices = @transform_2, window_bounds = array<i64: 1, 128>}, {pipeline_mode = #tpu.pipeline_mode<synchronous>, transform_indices = @transform_3, window_bounds = array<i64: 128, 128>}, {pipeline_mode = #tpu.pipeline_mode<synchronous>, transform_indices = @transform_4, window_bounds = array<i64: 1, 128>}, {transform_indices = @transform_5, window_bounds = array<i64: 32, 128>}, {transform_indices = @transform_6, window_bounds = array<i64: 32, 128>}, {transform_indices = @transform_7, window_bounds = array<i64: 32, 128>}]} {
    %c0_i32 = arith.constant 0 : i32
    %0 = arith.cmpi eq, %arg1, %c0_i32 : i32
    %1 = arith.extui %0 : i1 to i32
    %c0_i32_0 = arith.constant 0 : i32
    %2 = arith.cmpi ne, %1, %c0_i32_0 : i32
    scf.if %2 {
      %cst_120 = arith.constant 0.000000e+00 : f32
      %206 = vector.broadcast %cst_120 : f32 to vector<8x128xf32>
      %c0_121 = arith.constant 0 : index
      %c0_122 = arith.constant 0 : index
      %207 = vector.load %arg10[%c0_121, %c0_122] : memref<8x128xf32, #tpu.memory_space<vmem>>, vector<8x128xf32>
      tpu.vector_store %arg10[%c0_121, %c0_122], %206 {strides = array<i32>} : memref<8x128xf32, #tpu.memory_space<vmem>>, vector<8x128xf32>,
      %cst_123 = arith.constant 0.000000e+00 : f32
      %208 = vector.broadcast %cst_123 : f32 to vector<8x128xf32>
      %c0_124 = arith.constant 0 : index
      %c0_125 = arith.constant 0 : index
      %209 = vector.load %arg11[%c0_124, %c0_125] : memref<8x128xf32, #tpu.memory_space<vmem>>, vector<8x128xf32>
      tpu.vector_store %arg11[%c0_124, %c0_125], %208 {strides = array<i32>} : memref<8x128xf32, #tpu.memory_space<vmem>>, vector<8x128xf32>,
    } else {
    }
    %c0 = arith.constant 0 : index
    %c0_1 = arith.constant 0 : index
    %3 = vector.load %arg2[%c0, %c0_1] : memref<32x256xbf16, #tpu.memory_space<vmem>>, vector<32x256xbf16>
    %c0_2 = arith.constant 0 : index
    %c0_3 = arith.constant 0 : index
    %4 = vector.load %arg3[%c0_2, %c0_3] : memref<256x128xbf16, #tpu.memory_space<vmem>>, vector<256x128xbf16>
    %cst = arith.constant dense<0.000000e+00> : vector<32x128xf32>
    %5 = tpu.matmul %3, %4, %cst {dimension_numbers = #tpu.dot_dimension_numbers<[1], [0], [0], [1], [0, 0, 1, 1], [], []>} : vector<32x256xbf16>, vector<256x128xbf16>, vector<32x128xf32> -> vector<32x128xf32>
    %c0_4 = arith.constant 0 : index
    %c0_5 = arith.constant 0 : index
    %6 = vector.load %arg4[%c0_4, %c0_5] : memref<1x128xf32, #tpu.memory_space<vmem>>, vector<1x128xf32>
    %7 = vector.broadcast %6 : vector<1x128xf32> to vector<32x128xf32>
    %8 = arith.addf %5, %7 : vector<32x128xf32>
    %c0_6 = arith.constant 0 : index
    %c0_7 = arith.constant 0 : index
    %9 = vector.load %arg12[%c0_6, %c0_7] : memref<32x128xf32, #tpu.memory_space<vmem>>, vector<32x128xf32>
    tpu.vector_store %arg12[%c0_6, %c0_7], %8 {strides = array<i32>} : memref<32x128xf32, #tpu.memory_space<vmem>>, vector<32x128xf32>,
    %c0_i32_8 = arith.constant 0 : i32
    %c8_i32 = arith.constant 8 : i32
    %10 = arith.muli %c0_i32_8, %c8_i32 : i32
    %11 = tpu.assume_multiple %10, 8 : i32
    %12 = arith.index_cast %11 : i32 to index
    %c0_9 = arith.constant 0 : index
    %13 = vector.load %arg12[%12, %c0_9] : memref<32x128xf32, #tpu.memory_space<vmem>>, vector<8x128xf32>
    %c0_10 = arith.constant 0 : index
    %c0_11 = arith.constant 0 : index
    %14 = vector.load %arg10[%c0_10, %c0_11] : memref<8x128xf32, #tpu.memory_space<vmem>>, vector<8x128xf32>
    %cst_12 = arith.constant 1.000000e+00 : f32
    %15 = vector.broadcast %cst_12 : f32 to vector<8x128xf32>
    %16 = arith.cmpf ogt, %14, %15 : vector<8x128xf32>
    %17 = arith.extui %16 : vector<8x128xi1> to vector<8x128xi32>
    %18 = arith.sitofp %17 : vector<8x128xi32> to vector<8x128xf32>
    %cst_13 = arith.constant 9.900000e-01 : f32
    %19 = vector.broadcast %cst_13 : f32 to vector<8x128xf32>
    %20 = arith.mulf %19, %14 : vector<8x128xf32>
    %21 = arith.addf %20, %13 : vector<8x128xf32>
    %cst_14 = arith.constant 1.000000e+00 : f32
    %22 = vector.broadcast %cst_14 : f32 to vector<8x128xf32>
    %23 = arith.mulf %18, %22 : vector<8x128xf32>
    %24 = arith.subf %21, %23 : vector<8x128xf32>
    %c0_15 = arith.constant 0 : index
    %c0_16 = arith.constant 0 : index
    %25 = vector.load %arg10[%c0_15, %c0_16] : memref<8x128xf32, #tpu.memory_space<vmem>>, vector<8x128xf32>
    tpu.vector_store %arg10[%c0_15, %c0_16], %24 {strides = array<i32>} : memref<8x128xf32, #tpu.memory_space<vmem>>, vector<8x128xf32>,
    %cst_17 = arith.constant 1.000000e+00 : f32
    %26 = vector.broadcast %cst_17 : f32 to vector<8x128xf32>
    %27 = arith.cmpf ogt, %24, %26 : vector<8x128xf32>
    %28 = arith.extui %27 : vector<8x128xi1> to vector<8x128xi32>
    %29 = arith.sitofp %28 : vector<8x128xi32> to vector<8x128xf32>
    %30 = arith.index_cast %11 : i32 to index
    %c0_18 = arith.constant 0 : index
    %31 = vector.load %arg12[%30, %c0_18] : memref<32x128xf32, #tpu.memory_space<vmem>>, vector<8x128xf32>
    tpu.vector_store %arg12[%30, %c0_18], %29 {strides = array<i32>} : memref<32x128xf32, #tpu.memory_space<vmem>>, vector<8x128xf32>,
    %c1_i32 = arith.constant 1 : i32
    %c8_i32_19 = arith.constant 8 : i32
    %32 = arith.muli %c1_i32, %c8_i32_19 : i32
    %33 = tpu.assume_multiple %32, 8 : i32
    %34 = arith.index_cast %33 : i32 to index
    %c0_20 = arith.constant 0 : index
    %35 = vector.load %arg12[%34, %c0_20] : memref<32x128xf32, #tpu.memory_space<vmem>>, vector<8x128xf32>
    %c0_21 = arith.constant 0 : index
    %c0_22 = arith.constant 0 : index
    %36 = vector.load %arg10[%c0_21, %c0_22] : memref<8x128xf32, #tpu.memory_space<vmem>>, vector<8x128xf32>
    %cst_23 = arith.constant 1.000000e+00 : f32
    %37 = vector.broadcast %cst_23 : f32 to vector<8x128xf32>
    %38 = arith.cmpf ogt, %36, %37 : vector<8x128xf32>
    %39 = arith.extui %38 : vector<8x128xi1> to vector<8x128xi32>
    %40 = arith.sitofp %39 : vector<8x128xi32> to vector<8x128xf32>
    %cst_24 = arith.constant 9.900000e-01 : f32
    %41 = vector.broadcast %cst_24 : f32 to vector<8x128xf32>
    %42 = arith.mulf %41, %36 : vector<8x128xf32>
    %43 = arith.addf %42, %35 : vector<8x128xf32>
    %cst_25 = arith.constant 1.000000e+00 : f32
    %44 = vector.broadcast %cst_25 : f32 to vector<8x128xf32>
    %45 = arith.mulf %40, %44 : vector<8x128xf32>
    %46 = arith.subf %43, %45 : vector<8x128xf32>
    %c0_26 = arith.constant 0 : index
    %c0_27 = arith.constant 0 : index
    %47 = vector.load %arg10[%c0_26, %c0_27] : memref<8x128xf32, #tpu.memory_space<vmem>>, vector<8x128xf32>
    tpu.vector_store %arg10[%c0_26, %c0_27], %46 {strides = array<i32>} : memref<8x128xf32, #tpu.memory_space<vmem>>, vector<8x128xf32>,
    %cst_28 = arith.constant 1.000000e+00 : f32
    %48 = vector.broadcast %cst_28 : f32 to vector<8x128xf32>
    %49 = arith.cmpf ogt, %46, %48 : vector<8x128xf32>
    %50 = arith.extui %49 : vector<8x128xi1> to vector<8x128xi32>
    %51 = arith.sitofp %50 : vector<8x128xi32> to vector<8x128xf32>
    %52 = arith.index_cast %33 : i32 to index
    %c0_29 = arith.constant 0 : index
    %53 = vector.load %arg12[%52, %c0_29] : memref<32x128xf32, #tpu.memory_space<vmem>>, vector<8x128xf32>
    tpu.vector_store %arg12[%52, %c0_29], %51 {strides = array<i32>} : memref<32x128xf32, #tpu.memory_space<vmem>>, vector<8x128xf32>,
    %c2_i32 = arith.constant 2 : i32
    %c8_i32_30 = arith.constant 8 : i32
    %54 = arith.muli %c2_i32, %c8_i32_30 : i32
    %55 = tpu.assume_multiple %54, 8 : i32
    %56 = arith.index_cast %55 : i32 to index
    %c0_31 = arith.constant 0 : index
    %57 = vector.load %arg12[%56, %c0_31] : memref<32x128xf32, #tpu.memory_space<vmem>>, vector<8x128xf32>
    %c0_32 = arith.constant 0 : index
    %c0_33 = arith.constant 0 : index
    %58 = vector.load %arg10[%c0_32, %c0_33] : memref<8x128xf32, #tpu.memory_space<vmem>>, vector<8x128xf32>
    %cst_34 = arith.constant 1.000000e+00 : f32
    %59 = vector.broadcast %cst_34 : f32 to vector<8x128xf32>
    %60 = arith.cmpf ogt, %58, %59 : vector<8x128xf32>
    %61 = arith.extui %60 : vector<8x128xi1> to vector<8x128xi32>
    %62 = arith.sitofp %61 : vector<8x128xi32> to vector<8x128xf32>
    %cst_35 = arith.constant 9.900000e-01 : f32
    %63 = vector.broadcast %cst_35 : f32 to vector<8x128xf32>
    %64 = arith.mulf %63, %58 : vector<8x128xf32>
    %65 = arith.addf %64, %57 : vector<8x128xf32>
    %cst_36 = arith.constant 1.000000e+00 : f32
    %66 = vector.broadcast %cst_36 : f32 to vector<8x128xf32>
    %67 = arith.mulf %62, %66 : vector<8x128xf32>
    %68 = arith.subf %65, %67 : vector<8x128xf32>
    %c0_37 = arith.constant 0 : index
    %c0_38 = arith.constant 0 : index
    %69 = vector.load %arg10[%c0_37, %c0_38] : memref<8x128xf32, #tpu.memory_space<vmem>>, vector<8x128xf32>
    tpu.vector_store %arg10[%c0_37, %c0_38], %68 {strides = array<i32>} : memref<8x128xf32, #tpu.memory_space<vmem>>, vector<8x128xf32>,
    %cst_39 = arith.constant 1.000000e+00 : f32
    %70 = vector.broadcast %cst_39 : f32 to vector<8x128xf32>
    %71 = arith.cmpf ogt, %68, %70 : vector<8x128xf32>
    %72 = arith.extui %71 : vector<8x128xi1> to vector<8x128xi32>
    %73 = arith.sitofp %72 : vector<8x128xi32> to vector<8x128xf32>
    %74 = arith.index_cast %55 : i32 to index
    %c0_40 = arith.constant 0 : index
    %75 = vector.load %arg12[%74, %c0_40] : memref<32x128xf32, #tpu.memory_space<vmem>>, vector<8x128xf32>
    tpu.vector_store %arg12[%74, %c0_40], %73 {strides = array<i32>} : memref<32x128xf32, #tpu.memory_space<vmem>>, vector<8x128xf32>,
    %c3_i32 = arith.constant 3 : i32
    %c8_i32_41 = arith.constant 8 : i32
    %76 = arith.muli %c3_i32, %c8_i32_41 : i32
    %77 = tpu.assume_multiple %76, 8 : i32
    %78 = arith.index_cast %77 : i32 to index
    %c0_42 = arith.constant 0 : index
    %79 = vector.load %arg12[%78, %c0_42] : memref<32x128xf32, #tpu.memory_space<vmem>>, vector<8x128xf32>
    %c0_43 = arith.constant 0 : index
    %c0_44 = arith.constant 0 : index
    %80 = vector.load %arg10[%c0_43, %c0_44] : memref<8x128xf32, #tpu.memory_space<vmem>>, vector<8x128xf32>
    %cst_45 = arith.constant 1.000000e+00 : f32
    %81 = vector.broadcast %cst_45 : f32 to vector<8x128xf32>
    %82 = arith.cmpf ogt, %80, %81 : vector<8x128xf32>
    %83 = arith.extui %82 : vector<8x128xi1> to vector<8x128xi32>
    %84 = arith.sitofp %83 : vector<8x128xi32> to vector<8x128xf32>
    %cst_46 = arith.constant 9.900000e-01 : f32
    %85 = vector.broadcast %cst_46 : f32 to vector<8x128xf32>
    %86 = arith.mulf %85, %80 : vector<8x128xf32>
    %87 = arith.addf %86, %79 : vector<8x128xf32>
    %cst_47 = arith.constant 1.000000e+00 : f32
    %88 = vector.broadcast %cst_47 : f32 to vector<8x128xf32>
    %89 = arith.mulf %84, %88 : vector<8x128xf32>
    %90 = arith.subf %87, %89 : vector<8x128xf32>
    %c0_48 = arith.constant 0 : index
    %c0_49 = arith.constant 0 : index
    %91 = vector.load %arg10[%c0_48, %c0_49] : memref<8x128xf32, #tpu.memory_space<vmem>>, vector<8x128xf32>
    tpu.vector_store %arg10[%c0_48, %c0_49], %90 {strides = array<i32>} : memref<8x128xf32, #tpu.memory_space<vmem>>, vector<8x128xf32>,
    %cst_50 = arith.constant 1.000000e+00 : f32
    %92 = vector.broadcast %cst_50 : f32 to vector<8x128xf32>
    %93 = arith.cmpf ogt, %90, %92 : vector<8x128xf32>
    %94 = arith.extui %93 : vector<8x128xi1> to vector<8x128xi32>
    %95 = arith.sitofp %94 : vector<8x128xi32> to vector<8x128xf32>
    %96 = arith.index_cast %77 : i32 to index
    %c0_51 = arith.constant 0 : index
    %97 = vector.load %arg12[%96, %c0_51] : memref<32x128xf32, #tpu.memory_space<vmem>>, vector<8x128xf32>
    tpu.vector_store %arg12[%96, %c0_51], %95 {strides = array<i32>} : memref<32x128xf32, #tpu.memory_space<vmem>>, vector<8x128xf32>,
    %c4_i32 = arith.constant 4 : i32
    %c0_52 = arith.constant 0 : index
    %c0_53 = arith.constant 0 : index
    %98 = vector.load %arg12[%c0_52, %c0_53] : memref<32x128xf32, #tpu.memory_space<vmem>>, vector<32x128xf32>
    %99 = arith.truncf %98 : vector<32x128xf32> to vector<32x128xbf16>
    %c0_54 = arith.constant 0 : index
    %c0_55 = arith.constant 0 : index
    %100 = vector.load %arg7[%c0_54, %c0_55] : memref<32x128xbf16, #tpu.memory_space<vmem>>, vector<32x128xbf16>
    tpu.vector_store %arg7[%c0_54, %c0_55], %99 {strides = array<i32>} : memref<32x128xbf16, #tpu.memory_space<vmem>>, vector<32x128xbf16>,
    %c0_56 = arith.constant 0 : index
    %c0_57 = arith.constant 0 : index
    %101 = vector.load %arg5[%c0_56, %c0_57] : memref<128x128xbf16, #tpu.memory_space<vmem>>, vector<128x128xbf16>
    %cst_58 = arith.constant dense<0.000000e+00> : vector<32x128xf32>
    %102 = tpu.matmul %99, %101, %cst_58 {dimension_numbers = #tpu.dot_dimension_numbers<[1], [0], [0], [1], [0, 0, 1, 1], [], []>} : vector<32x128xbf16>, vector<128x128xbf16>, vector<32x128xf32> -> vector<32x128xf32>
    %c0_59 = arith.constant 0 : index
    %c0_60 = arith.constant 0 : index
    %103 = vector.load %arg6[%c0_59, %c0_60] : memref<1x128xf32, #tpu.memory_space<vmem>>, vector<1x128xf32>
    %104 = vector.broadcast %103 : vector<1x128xf32> to vector<32x128xf32>
    %105 = arith.addf %102, %104 : vector<32x128xf32>
    %c0_61 = arith.constant 0 : index
    %c0_62 = arith.constant 0 : index
    %106 = vector.load %arg13[%c0_61, %c0_62] : memref<32x128xf32, #tpu.memory_space<vmem>>, vector<32x128xf32>
    tpu.vector_store %arg13[%c0_61, %c0_62], %105 {strides = array<i32>} : memref<32x128xf32, #tpu.memory_space<vmem>>, vector<32x128xf32>,
    %c0_i32_63 = arith.constant 0 : i32
    %c8_i32_64 = arith.constant 8 : i32
    %107 = arith.muli %c0_i32_63, %c8_i32_64 : i32
    %108 = tpu.assume_multiple %107, 8 : i32
    %109 = arith.index_cast %108 : i32 to index
    %c0_65 = arith.constant 0 : index
    %110 = vector.load %arg13[%109, %c0_65] : memref<32x128xf32, #tpu.memory_space<vmem>>, vector<8x128xf32>
    %c0_66 = arith.constant 0 : index
    %c0_67 = arith.constant 0 : index
    %111 = vector.load %arg11[%c0_66, %c0_67] : memref<8x128xf32, #tpu.memory_space<vmem>>, vector<8x128xf32>
    %cst_68 = arith.constant 1.000000e+00 : f32
    %112 = vector.broadcast %cst_68 : f32 to vector<8x128xf32>
    %113 = arith.cmpf ogt, %111, %112 : vector<8x128xf32>
    %114 = arith.extui %113 : vector<8x128xi1> to vector<8x128xi32>
    %115 = arith.sitofp %114 : vector<8x128xi32> to vector<8x128xf32>
    %cst_69 = arith.constant 9.900000e-01 : f32
    %116 = vector.broadcast %cst_69 : f32 to vector<8x128xf32>
    %117 = arith.mulf %116, %111 : vector<8x128xf32>
    %118 = arith.addf %117, %110 : vector<8x128xf32>
    %cst_70 = arith.constant 1.000000e+00 : f32
    %119 = vector.broadcast %cst_70 : f32 to vector<8x128xf32>
    %120 = arith.mulf %115, %119 : vector<8x128xf32>
    %121 = arith.subf %118, %120 : vector<8x128xf32>
    %c0_71 = arith.constant 0 : index
    %c0_72 = arith.constant 0 : index
    %122 = vector.load %arg11[%c0_71, %c0_72] : memref<8x128xf32, #tpu.memory_space<vmem>>, vector<8x128xf32>
    tpu.vector_store %arg11[%c0_71, %c0_72], %121 {strides = array<i32>} : memref<8x128xf32, #tpu.memory_space<vmem>>, vector<8x128xf32>,
    %123 = arith.index_cast %108 : i32 to index
    %c0_73 = arith.constant 0 : index
    %124 = vector.load %arg9[%123, %c0_73] : memref<32x128xf32, #tpu.memory_space<vmem>>, vector<8x128xf32>
    tpu.vector_store %arg9[%123, %c0_73], %121 {strides = array<i32>} : memref<32x128xf32, #tpu.memory_space<vmem>>, vector<8x128xf32>,
    %cst_74 = arith.constant 1.000000e+00 : f32
    %125 = vector.broadcast %cst_74 : f32 to vector<8x128xf32>
    %126 = arith.cmpf ogt, %121, %125 : vector<8x128xf32>
    %127 = arith.extui %126 : vector<8x128xi1> to vector<8x128xi32>
    %128 = arith.sitofp %127 : vector<8x128xi32> to vector<8x128xf32>
    %129 = arith.index_cast %108 : i32 to index
    %c0_75 = arith.constant 0 : index
    %130 = vector.load %arg13[%129, %c0_75] : memref<32x128xf32, #tpu.memory_space<vmem>>, vector<8x128xf32>
    tpu.vector_store %arg13[%129, %c0_75], %128 {strides = array<i32>} : memref<32x128xf32, #tpu.memory_space<vmem>>, vector<8x128xf32>,
    %c1_i32_76 = arith.constant 1 : i32
    %c8_i32_77 = arith.constant 8 : i32
    %131 = arith.muli %c1_i32_76, %c8_i32_77 : i32
    %132 = tpu.assume_multiple %131, 8 : i32
    %133 = arith.index_cast %132 : i32 to index
    %c0_78 = arith.constant 0 : index
    %134 = vector.load %arg13[%133, %c0_78] : memref<32x128xf32, #tpu.memory_space<vmem>>, vector<8x128xf32>
    %c0_79 = arith.constant 0 : index
    %c0_80 = arith.constant 0 : index
    %135 = vector.load %arg11[%c0_79, %c0_80] : memref<8x128xf32, #tpu.memory_space<vmem>>, vector<8x128xf32>
    %cst_81 = arith.constant 1.000000e+00 : f32
    %136 = vector.broadcast %cst_81 : f32 to vector<8x128xf32>
    %137 = arith.cmpf ogt, %135, %136 : vector<8x128xf32>
    %138 = arith.extui %137 : vector<8x128xi1> to vector<8x128xi32>
    %139 = arith.sitofp %138 : vector<8x128xi32> to vector<8x128xf32>
    %cst_82 = arith.constant 9.900000e-01 : f32
    %140 = vector.broadcast %cst_82 : f32 to vector<8x128xf32>
    %141 = arith.mulf %140, %135 : vector<8x128xf32>
    %142 = arith.addf %141, %134 : vector<8x128xf32>
    %cst_83 = arith.constant 1.000000e+00 : f32
    %143 = vector.broadcast %cst_83 : f32 to vector<8x128xf32>
    %144 = arith.mulf %139, %143 : vector<8x128xf32>
    %145 = arith.subf %142, %144 : vector<8x128xf32>
    %c0_84 = arith.constant 0 : index
    %c0_85 = arith.constant 0 : index
    %146 = vector.load %arg11[%c0_84, %c0_85] : memref<8x128xf32, #tpu.memory_space<vmem>>, vector<8x128xf32>
    tpu.vector_store %arg11[%c0_84, %c0_85], %145 {strides = array<i32>} : memref<8x128xf32, #tpu.memory_space<vmem>>, vector<8x128xf32>,
    %147 = arith.index_cast %132 : i32 to index
    %c0_86 = arith.constant 0 : index
    %148 = vector.load %arg9[%147, %c0_86] : memref<32x128xf32, #tpu.memory_space<vmem>>, vector<8x128xf32>
    tpu.vector_store %arg9[%147, %c0_86], %145 {strides = array<i32>} : memref<32x128xf32, #tpu.memory_space<vmem>>, vector<8x128xf32>,
    %cst_87 = arith.constant 1.000000e+00 : f32
    %149 = vector.broadcast %cst_87 : f32 to vector<8x128xf32>
    %150 = arith.cmpf ogt, %145, %149 : vector<8x128xf32>
    %151 = arith.extui %150 : vector<8x128xi1> to vector<8x128xi32>
    %152 = arith.sitofp %151 : vector<8x128xi32> to vector<8x128xf32>
    %153 = arith.index_cast %132 : i32 to index
    %c0_88 = arith.constant 0 : index
    %154 = vector.load %arg13[%153, %c0_88] : memref<32x128xf32, #tpu.memory_space<vmem>>, vector<8x128xf32>
    tpu.vector_store %arg13[%153, %c0_88], %152 {strides = array<i32>} : memref<32x128xf32, #tpu.memory_space<vmem>>, vector<8x128xf32>,
    %c2_i32_89 = arith.constant 2 : i32
    %c8_i32_90 = arith.constant 8 : i32
    %155 = arith.muli %c2_i32_89, %c8_i32_90 : i32
    %156 = tpu.assume_multiple %155, 8 : i32
    %157 = arith.index_cast %156 : i32 to index
    %c0_91 = arith.constant 0 : index
    %158 = vector.load %arg13[%157, %c0_91] : memref<32x128xf32, #tpu.memory_space<vmem>>, vector<8x128xf32>
    %c0_92 = arith.constant 0 : index
    %c0_93 = arith.constant 0 : index
    %159 = vector.load %arg11[%c0_92, %c0_93] : memref<8x128xf32, #tpu.memory_space<vmem>>, vector<8x128xf32>
    %cst_94 = arith.constant 1.000000e+00 : f32
    %160 = vector.broadcast %cst_94 : f32 to vector<8x128xf32>
    %161 = arith.cmpf ogt, %159, %160 : vector<8x128xf32>
    %162 = arith.extui %161 : vector<8x128xi1> to vector<8x128xi32>
    %163 = arith.sitofp %162 : vector<8x128xi32> to vector<8x128xf32>
    %cst_95 = arith.constant 9.900000e-01 : f32
    %164 = vector.broadcast %cst_95 : f32 to vector<8x128xf32>
    %165 = arith.mulf %164, %159 : vector<8x128xf32>
    %166 = arith.addf %165, %158 : vector<8x128xf32>
    %cst_96 = arith.constant 1.000000e+00 : f32
    %167 = vector.broadcast %cst_96 : f32 to vector<8x128xf32>
    %168 = arith.mulf %163, %167 : vector<8x128xf32>
    %169 = arith.subf %166, %168 : vector<8x128xf32>
    %c0_97 = arith.constant 0 : index
    %c0_98 = arith.constant 0 : index
    %170 = vector.load %arg11[%c0_97, %c0_98] : memref<8x128xf32, #tpu.memory_space<vmem>>, vector<8x128xf32>
    tpu.vector_store %arg11[%c0_97, %c0_98], %169 {strides = array<i32>} : memref<8x128xf32, #tpu.memory_space<vmem>>, vector<8x128xf32>,
    %171 = arith.index_cast %156 : i32 to index
    %c0_99 = arith.constant 0 : index
    %172 = vector.load %arg9[%171, %c0_99] : memref<32x128xf32, #tpu.memory_space<vmem>>, vector<8x128xf32>
    tpu.vector_store %arg9[%171, %c0_99], %169 {strides = array<i32>} : memref<32x128xf32, #tpu.memory_space<vmem>>, vector<8x128xf32>,
    %cst_100 = arith.constant 1.000000e+00 : f32
    %173 = vector.broadcast %cst_100 : f32 to vector<8x128xf32>
    %174 = arith.cmpf ogt, %169, %173 : vector<8x128xf32>
    %175 = arith.extui %174 : vector<8x128xi1> to vector<8x128xi32>
    %176 = arith.sitofp %175 : vector<8x128xi32> to vector<8x128xf32>
    %177 = arith.index_cast %156 : i32 to index
    %c0_101 = arith.constant 0 : index
    %178 = vector.load %arg13[%177, %c0_101] : memref<32x128xf32, #tpu.memory_space<vmem>>, vector<8x128xf32>
    tpu.vector_store %arg13[%177, %c0_101], %176 {strides = array<i32>} : memref<32x128xf32, #tpu.memory_space<vmem>>, vector<8x128xf32>,
    %c3_i32_102 = arith.constant 3 : i32
    %c8_i32_103 = arith.constant 8 : i32
    %179 = arith.muli %c3_i32_102, %c8_i32_103 : i32
    %180 = tpu.assume_multiple %179, 8 : i32
    %181 = arith.index_cast %180 : i32 to index
    %c0_104 = arith.constant 0 : index
    %182 = vector.load %arg13[%181, %c0_104] : memref<32x128xf32, #tpu.memory_space<vmem>>, vector<8x128xf32>
    %c0_105 = arith.constant 0 : index
    %c0_106 = arith.constant 0 : index
    %183 = vector.load %arg11[%c0_105, %c0_106] : memref<8x128xf32, #tpu.memory_space<vmem>>, vector<8x128xf32>
    %cst_107 = arith.constant 1.000000e+00 : f32
    %184 = vector.broadcast %cst_107 : f32 to vector<8x128xf32>
    %185 = arith.cmpf ogt, %183, %184 : vector<8x128xf32>
    %186 = arith.extui %185 : vector<8x128xi1> to vector<8x128xi32>
    %187 = arith.sitofp %186 : vector<8x128xi32> to vector<8x128xf32>
    %cst_108 = arith.constant 9.900000e-01 : f32
    %188 = vector.broadcast %cst_108 : f32 to vector<8x128xf32>
    %189 = arith.mulf %188, %183 : vector<8x128xf32>
    %190 = arith.addf %189, %182 : vector<8x128xf32>
    %cst_109 = arith.constant 1.000000e+00 : f32
    %191 = vector.broadcast %cst_109 : f32 to vector<8x128xf32>
    %192 = arith.mulf %187, %191 : vector<8x128xf32>
    %193 = arith.subf %190, %192 : vector<8x128xf32>
    %c0_110 = arith.constant 0 : index
    %c0_111 = arith.constant 0 : index
    %194 = vector.load %arg11[%c0_110, %c0_111] : memref<8x128xf32, #tpu.memory_space<vmem>>, vector<8x128xf32>
    tpu.vector_store %arg11[%c0_110, %c0_111], %193 {strides = array<i32>} : memref<8x128xf32, #tpu.memory_space<vmem>>, vector<8x128xf32>,
    %195 = arith.index_cast %180 : i32 to index
    %c0_112 = arith.constant 0 : index
    %196 = vector.load %arg9[%195, %c0_112] : memref<32x128xf32, #tpu.memory_space<vmem>>, vector<8x128xf32>
    tpu.vector_store %arg9[%195, %c0_112], %193 {strides = array<i32>} : memref<32x128xf32, #tpu.memory_space<vmem>>, vector<8x128xf32>,
    %cst_113 = arith.constant 1.000000e+00 : f32
    %197 = vector.broadcast %cst_113 : f32 to vector<8x128xf32>
    %198 = arith.cmpf ogt, %193, %197 : vector<8x128xf32>
    %199 = arith.extui %198 : vector<8x128xi1> to vector<8x128xi32>
    %200 = arith.sitofp %199 : vector<8x128xi32> to vector<8x128xf32>
    %201 = arith.index_cast %180 : i32 to index
    %c0_114 = arith.constant 0 : index
    %202 = vector.load %arg13[%201, %c0_114] : memref<32x128xf32, #tpu.memory_space<vmem>>, vector<8x128xf32>
    tpu.vector_store %arg13[%201, %c0_114], %200 {strides = array<i32>} : memref<32x128xf32, #tpu.memory_space<vmem>>, vector<8x128xf32>,
    %c4_i32_115 = arith.constant 4 : i32
    %c0_116 = arith.constant 0 : index
    %c0_117 = arith.constant 0 : index
    %203 = vector.load %arg13[%c0_116, %c0_117] : memref<32x128xf32, #tpu.memory_space<vmem>>, vector<32x128xf32>
    %204 = arith.truncf %203 : vector<32x128xf32> to vector<32x128xbf16>
    %c0_118 = arith.constant 0 : index
    %c0_119 = arith.constant 0 : index
    %205 = vector.load %arg8[%c0_118, %c0_119] : memref<32x128xbf16, #tpu.memory_space<vmem>>, vector<32x128xbf16>
    tpu.vector_store %arg8[%c0_118, %c0_119], %204 {strides = array<i32>} : memref<32x128xbf16, #tpu.memory_space<vmem>>, vector<32x128xbf16>,
    return
  }
  func.func @transform_0(%arg0: i32, %arg1: i32) -> (i32, i32) {
    %c3_i32 = arith.constant 3 : i32
    %0 = arith.muli %arg0, %c3_i32 : i32
    %1 = arith.addi %0, %arg1 : i32
    %c0_i32 = arith.constant 0 : i32
    %c0_i32_0 = arith.constant 0 : i32
    return %1, %c0_i32 : i32, i32
  }
  func.func @transform_1(%arg0: i32, %arg1: i32) -> (i32, i32) {
    %c0_i32 = arith.constant 0 : i32
    %c0_i32_0 = arith.constant 0 : i32
    %c0_i32_1 = arith.constant 0 : i32
    return %c0_i32, %c0_i32_0 : i32, i32
  }
  func.func @transform_2(%arg0: i32, %arg1: i32) -> (i32, i32) {
    %c0_i32 = arith.constant 0 : i32
    %c0_i32_0 = arith.constant 0 : i32
    %c0_i32_1 = arith.constant 0 : i32
    return %c0_i32, %c0_i32_0 : i32, i32
  }
  func.func @transform_3(%arg0: i32, %arg1: i32) -> (i32, i32) {
    %c0_i32 = arith.constant 0 : i32
    %c0_i32_0 = arith.constant 0 : i32
    %c0_i32_1 = arith.constant 0 : i32
    return %c0_i32, %c0_i32_0 : i32, i32
  }
  func.func @transform_4(%arg0: i32, %arg1: i32) -> (i32, i32) {
    %c0_i32 = arith.constant 0 : i32
    %c0_i32_0 = arith.constant 0 : i32
    %c0_i32_1 = arith.constant 0 : i32
    return %c0_i32, %c0_i32_0 : i32, i32
  }
  func.func @transform_5(%arg0: i32, %arg1: i32) -> (i32, i32) {
    %c3_i32 = arith.constant 3 : i32
    %0 = arith.muli %arg0, %c3_i32 : i32
    %1 = arith.addi %0, %arg1 : i32
    %c0_i32 = arith.constant 0 : i32
    %c0_i32_0 = arith.constant 0 : i32
    return %1, %c0_i32 : i32, i32
  }
  func.func @transform_6(%arg0: i32, %arg1: i32) -> (i32, i32) {
    %c3_i32 = arith.constant 3 : i32
    %0 = arith.muli %arg0, %c3_i32 : i32
    %1 = arith.addi %0, %arg1 : i32
    %c0_i32 = arith.constant 0 : i32
    %c0_i32_0 = arith.constant 0 : i32
    return %1, %c0_i32 : i32, i32
  }
  func.func @transform_7(%arg0: i32, %arg1: i32) -> (i32, i32) {
    %c3_i32 = arith.constant 3 : i32
    %0 = arith.muli %arg0, %c3_i32 : i32
    %1 = arith.addi %0, %arg1 : i32
    %c0_i32 = arith.constant 0 : i32
    %c0_i32_0 = arith.constant 0 : i32
    return %1, %c0_i32 : i32, i32
  }
}

</mosaic_0001>

<llo_original>
// kernel: tpu_custom_call.1
$region0: #{tpu_custom_call.1}
  #allocation0 [shape = 'u32[]', space=smem, size = 0x4, offset = 0x4, fixed_abs, tag = 'smem constant byte address 0x4 - core index']
  #allocation1 [shape = 'u32[72,128]{1,0:T(1,128)}', space=vmem, size = 0x9000, scoped, tag = 'internal scratch']
  #allocation2 [shape = 'f32[8,128]{1,0:T(8,128)}', space=vmem, size = 0x1000, scoped, tag = 'scratch operand']
  #allocation3 [shape = 'f32[8,128]{1,0:T(8,128)}', space=vmem, size = 0x1000, scoped, tag = 'scratch operand']
  #allocation4 [shape = 'f32[32,128]{1,0:T(8,128)}', space=vmem, size = 0x4000, scoped, tag = 'scratch operand']
  #allocation5 [shape = 'f32[32,128]{1,0:T(8,128)}', space=vmem, size = 0x4000, scoped, tag = 'scratch operand']
  %s0 = inlined_call_operand.hbm [shape: bf16[96,256], index: 0, kind: input, shape index: {}]
  %s1 = inlined_call_operand.hbm [shape: bf16[256,128], index: 1, kind: input, shape index: {}]
  %s2 = inlined_call_operand.vmem [shape: f32[1,128], index: 2, kind: input, shape index: {}]
  %s3 = inlined_call_operand.hbm [shape: bf16[128,128], index: 3, kind: input, shape index: {}]
  %s4 = inlined_call_operand.vmem [shape: f32[1,128], index: 4, kind: input, shape index: {}]
  %s5 = inlined_call_operand.hbm [shape: bf16[96,128], index: 5, kind: output, shape index: {0}]
  %s6 = inlined_call_operand.hbm [shape: bf16[96,128], index: 6, kind: output, shape index: {1}]
  %s7 = inlined_call_operand.hbm [shape: f32[96,128], index: 7, kind: output, shape index: {2}]
  %8 = xla_tuple %s5, %s6, %s7
  %s9 = sld [smem:[#allocation0]]
  $region85: #{tpu_custom_call.1} parent=0
    _
  %s11 = ssub.s32 1, %s9
  %s12 = scalar_select 0, %s11, %s9
  $region1: #{tpu_custom_call.1} parent=0
    #allocation6 [shape = 'u8[32768]{0}', space=vmem, size = 0x8000, scoped, tag = 'input window, operand 0']
    #allocation7 [shape = 's32[2]{0}', space=sflag, size = 0x8, scoped, tag = 'scoped memory for tpu_custom_call.1']
    #allocation8 [shape = 's32[2]{0}', space=sflag, size = 0x8, scoped, tag = 'scoped memory for tpu_custom_call.1']
    #allocation9 [shape = 'u8[65536]{0}', space=vmem, size = 0x10000, scoped, tag = 'input window, operand 1, single buffered']
    #allocation10 [shape = 's32[1]{0}', space=sflag, size = 0x4, scoped, tag = 'scoped memory for tpu_custom_call.1']
    #allocation11 [shape = 'u8[32768]{0}', space=vmem, size = 0x8000, scoped, tag = 'input window, operand 3, single buffered']
    #allocation12 [shape = 'u8[16384]{0}', space=vmem, size = 0x4000, scoped, tag = 'output window, operand 0']
    #allocation13 [shape = 'u8[16384]{0}', space=vmem, size = 0x4000, scoped, tag = 'output window, operand 1']
    #allocation14 [shape = 's32[2]{0}', space=sflag, size = 0x8, scoped, tag = 'scoped memory for tpu_custom_call.1']
    #allocation15 [shape = 'u8[32768]{0}', space=vmem, size = 0x8000, scoped, tag = 'output window, operand 2']
    %13 = vsyncpa [#allocation7], 0
    %s14 = scalar_lea.sflag [#allocation7], 1
    %15 = vsyncpa %s14, 0
    %16 = vsyncpa [#allocation10], 0
    %17 = vsyncpa [#allocation8], 0
    %s18 = scalar_lea.sflag [#allocation8], 1
    %19 = vsyncpa %s18, 0
    %20 = vsyncpa [#allocation14], 0
    %s21 = scalar_lea.sflag [#allocation14], 1
    %22 = vsyncpa %s21, 0
    loop: start=0, step=1, limit=5
    $region2: #{tpu_custom_call.1} parent=1 // loop_pre_header
      _
    $region3: #{tpu_custom_call.1} parent=1 // loop_header
      %s24 = sphi 0, %s28
      %p25 = scmp.ge.s32.totalorder %s24, 5
      %s31 = sphi 0, %s43
      %s32 = sphi 0, %s39
      %s33 = sphi 0, %s31
      %s34 = sphi 0, %s32
      %s35 = sphi 0, %s33
      %s36 = sphi 0, %s34
      %s50 = sphi 0, %s52
      %s53 = sphi 0, %s50
      %s54 = sphi 0, %s53
      %s70 = sphi 0, %s54
      %s74 = sphi 0, %s74
      %s76 = sphi 0, %s74
      %s77 = sphi 0, %s76
      %s91 = sphi 0, %s77
      %s95 = sphi 0, %s95
      %s97 = sphi 0, %s95
      %s98 = sphi 0, %s97
      %s112 = sphi 0, %s98
      %s116 = sphi 0, %s116
      %s118 = sphi 0, %s116
      %s119 = sphi 0, %s118
      %s133 = sphi 0, %s119
      %s137 = sphi 0, %s137
      %s139 = sphi 0, %s137
      %s140 = sphi 0, %s139
      %s154 = sphi 0, %s140
      %s164 = sphi 0, %s166
      %s167 = sphi 0, %s164
      %s168 = sphi 0, %s167
      %s184 = sphi 0, %s168
      %s194 = sphi 0, %s196
      %s197 = sphi 0, %s194
      %s198 = sphi 0, %s197
      %s214 = sphi 0, %s198
      %s224 = sphi 0, %s226
      %s227 = sphi 0, %s224
      %s228 = sphi 0, %s227
      %s244 = sphi 0, %s228
    $region4: #{tpu_custom_call.1} parent=1 // loop_header_branch
      %27 = sbr.rel (%p25) target = $region8
    $region5: #{tpu_custom_call.1} parent=1 // loop_body
      %s29 = ssub.s32 %s24, 1
      %s30 = ssub.s32 %s24, 2
      %s37 = sadd.s32 1, %s32
      %p38 = scmp.ge.s32.totalorder %s37, 3
      %s39 = scalar_select %p38, 0, %s37
      %s40 = sadd.s32 1, %s31
      %s41 = scalar_select %p38, %s40, %s31
      %p42 = scmp.ge.s32.totalorder %s41, 1
      %s43 = scalar_select %p42, 0, %s41
      %s44 = smul.u32 %s31, 3
      %s45 = sadd.s32 %s44, %s32
      %s46 = smul.u32 %s43, 3
      %s47 = sadd.s32 %s46, %s39
      %s48 = ssub.s32 %s45, %s47
      %p49 = scmp.eq.s32.totalorder %s48, 0
      %s51 = sadd.s32 %s50, 1
      %s52 = scalar_select %p49, %s50, %s51
      %p55 = pneg %p49
      %p56 = scmp.eq.s32.totalorder %s24, 2
      %p57 = por %p55, %p56
      %p58 = scmp.ne.s32.totalorder %s50, %s53
      %p59 = scmp.eq.s32.totalorder %s24, 0
      %p60 = por %p58, %p59
      %p61 = scmp.ne.s32.totalorder %s50, %s53
      %p62 = scmp.eq.s32.totalorder %s29, 2
      %p63 = por %p61, %p62
      %p64 = scmp.ne.s32.totalorder %s53, %s54
      %p65 = scmp.eq.s32.totalorder %s29, 0
      %p66 = por %p64, %p65
      %p67 = scmp.ne.s32.totalorder %s53, %s54
      %p68 = scmp.eq.s32.totalorder %s30, 2
      %p69 = por %p67, %p68
      %p71 = scmp.ne.s32.totalorder %s54, %s70
      %p72 = scmp.eq.s32.totalorder %s30, 0
      %p73 = por %p71, %p72
      %s75 = sadd.s32 %s74, 1
      %p78 = scmp.eq.s32.totalorder %s24, 2
      %p79 = scmp.ne.s32.totalorder %s74, %s76
      %p80 = scmp.eq.s32.totalorder %s24, 0
      %p81 = por %p79, %p80
      %p82 = scmp.ne.s32.totalorder %s74, %s76
      %p83 = scmp.eq.s32.totalorder %s29, 2
      %p84 = por %p82, %p83
      %p85 = scmp.ne.s32.totalorder %s76, %s77
      %p86 = scmp.eq.s32.totalorder %s29, 0
      %p87 = por %p85, %p86
      %p88 = scmp.ne.s32.totalorder %s76, %s77
      %p89 = scmp.eq.s32.totalorder %s30, 2
      %p90 = por %p88, %p89
      %p92 = scmp.ne.s32.totalorder %s77, %s91
      %p93 = scmp.eq.s32.totalorder %s30, 0
      %p94 = por %p92, %p93
      %s96 = sadd.s32 %s95, 1
      %p99 = scmp.eq.s32.totalorder %s24, 2
      %p100 = scmp.ne.s32.totalorder %s95, %s97
      %p101 = scmp.eq.s32.totalorder %s24, 0
      %p102 = por %p100, %p101
      %p103 = scmp.ne.s32.totalorder %s95, %s97
      %p104 = scmp.eq.s32.totalorder %s29, 2
      %p105 = por %p103, %p104
      %p106 = scmp.ne.s32.totalorder %s97, %s98
      %p107 = scmp.eq.s32.totalorder %s29, 0
      %p108 = por %p106, %p107
      %p109 = scmp.ne.s32.totalorder %s97, %s98
      %p110 = scmp.eq.s32.totalorder %s30, 2
      %p111 = por %p109, %p110
      %p113 = scmp.ne.s32.totalorder %s98, %s112
      %p114 = scmp.eq.s32.totalorder %s30, 0
      %p115 = por %p113, %p114
      %s117 = sadd.s32 %s116, 1
      %p120 = scmp.eq.s32.totalorder %s24, 2
      %p121 = scmp.ne.s32.totalorder %s116, %s118
      %p122 = scmp.eq.s32.totalorder %s24, 0
      %p123 = por %p121, %p122
      %p124 = scmp.ne.s32.totalorder %s116, %s118
      %p125 = scmp.eq.s32.totalorder %s29, 2
      %p126 = por %p124, %p125
      %p127 = scmp.ne.s32.totalorder %s118, %s119
      %p128 = scmp.eq.s32.totalorder %s29, 0
      %p129 = por %p127, %p128
      %p130 = scmp.ne.s32.totalorder %s118, %s119
      %p131 = scmp.eq.s32.totalorder %s30, 2
      %p132 = por %p130, %p131
      %p134 = scmp.ne.s32.totalorder %s119, %s133
      %p135 = scmp.eq.s32.totalorder %s30, 0
      %p136 = por %p134, %p135
      %s138 = sadd.s32 %s137, 1
      %p141 = scmp.eq.s32.totalorder %s24, 2
      %p142 = scmp.ne.s32.totalorder %s137, %s139
      %p143 = scmp.eq.s32.totalorder %s24, 0
      %p144 = por %p142, %p143
      %p145 = scmp.ne.s32.totalorder %s137, %s139
      %p146 = scmp.eq.s32.totalorder %s29, 2
      %p147 = por %p145, %p146
      %p148 = scmp.ne.s32.totalorder %s139, %s140
      %p149 = scmp.eq.s32.totalorder %s29, 0
      %p150 = por %p148, %p149
      %p151 = scmp.ne.s32.totalorder %s139, %s140
      %p152 = scmp.eq.s32.totalorder %s30, 2
      %p153 = por %p151, %p152
      %p155 = scmp.ne.s32.totalorder %s140, %s154
      %p156 = scmp.eq.s32.totalorder %s30, 0
      %p157 = por %p155, %p156
      %s158 = smul.u32 %s31, 3
      %s159 = sadd.s32 %s158, %s32
      %s160 = smul.u32 %s43, 3
      %s161 = sadd.s32 %s160, %s39
      %s162 = ssub.s32 %s159, %s161
      %p163 = scmp.eq.s32.totalorder %s162, 0
      %s165 = sadd.s32 %s164, 1
      %s166 = scalar_select %p163, %s164, %s165
      %p169 = pneg %p163
      %p170 = scmp.eq.s32.totalorder %s24, 2
      %p171 = por %p169, %p170
      %p172 = scmp.ne.s32.totalorder %s164, %s167
      %p173 = scmp.eq.s32.totalorder %s24, 0
      %p174 = por %p172, %p173
      %p175 = scmp.ne.s32.totalorder %s164, %s167
      %p176 = scmp.eq.s32.totalorder %s29, 2
      %p177 = por %p175, %p176
      %p178 = scmp.ne.s32.totalorder %s167, %s168
      %p179 = scmp.eq.s32.totalorder %s29, 0
      %p180 = por %p178, %p179
      %p181 = scmp.ne.s32.totalorder %s167, %s168
      %p182 = scmp.eq.s32.totalorder %s30, 2
      %p183 = por %p181, %p182
      %p185 = scmp.ne.s32.totalorder %s168, %s184
      %p186 = scmp.eq.s32.totalorder %s30, 0
      %p187 = por %p185, %p186
      %s188 = smul.u32 %s31, 3
      %s189 = sadd.s32 %s188, %s32
      %s190 = smul.u32 %s43, 3
      %s191 = sadd.s32 %s190, %s39
      %s192 = ssub.s32 %s189, %s191
      %p193 = scmp.eq.s32.totalorder %s192, 0
      %s195 = sadd.s32 %s194, 1
      %s196 = scalar_select %p193, %s194, %s195
      %p199 = pneg %p193
      %p200 = scmp.eq.s32.totalorder %s24, 2
      %p201 = por %p199, %p200
      %p202 = scmp.ne.s32.totalorder %s194, %s197
      %p203 = scmp.eq.s32.totalorder %s24, 0
      %p204 = por %p202, %p203
      %p205 = scmp.ne.s32.totalorder %s194, %s197
      %p206 = scmp.eq.s32.totalorder %s29, 2
      %p207 = por %p205, %p206
      %p208 = scmp.ne.s32.totalorder %s197, %s198
      %p209 = scmp.eq.s32.totalorder %s29, 0
      %p210 = por %p208, %p209
      %p211 = scmp.ne.s32.totalorder %s197, %s198
      %p212 = scmp.eq.s32.totalorder %s30, 2
      %p213 = por %p211, %p212
      %p215 = scmp.ne.s32.totalorder %s198, %s214
      %p216 = scmp.eq.s32.totalorder %s30, 0
      %p217 = por %p215, %p216
      %s218 = smul.u32 %s31, 3
      %s219 = sadd.s32 %s218, %s32
      %s220 = smul.u32 %s43, 3
      %s221 = sadd.s32 %s220, %s39
      %s222 = ssub.s32 %s219, %s221
      %p223 = scmp.eq.s32.totalorder %s222, 0
      %s225 = sadd.s32 %s224, 1
      %s226 = scalar_select %p223, %s224, %s225
      %p229 = pneg %p223
      %p230 = scmp.eq.s32.totalorder %s24, 2
      %p231 = por %p229, %p230
      %p232 = scmp.ne.s32.totalorder %s224, %s227
      %p233 = scmp.eq.s32.totalorder %s24, 0
      %p234 = por %p232, %p233
      %p235 = scmp.ne.s32.totalorder %s224, %s227
      %p236 = scmp.eq.s32.totalorder %s29, 2
      %p237 = por %p235, %p236
      %p238 = scmp.ne.s32.totalorder %s227, %s228
      %p239 = scmp.eq.s32.totalorder %s29, 0
      %p240 = por %p238, %p239
      %p241 = scmp.ne.s32.totalorder %s227, %s228
      %p242 = scmp.eq.s32.totalorder %s30, 2
      %p243 = por %p241, %p242
      %p245 = scmp.ne.s32.totalorder %s228, %s244
      %p246 = scmp.eq.s32.totalorder %s30, 0
      %p247 = por %p245, %p246
      %p248 = scmp.le.s32.totalorder 1, %s24
      %p249 = scmp.lt.s32.totalorder %s24, 4
      %p250 = pnand %p248, %p249
      %p251 = pneg %p250
      // Predicated region
      $region9: #{tpu_custom_call.1} parent=5 // pred_check
        _
      $region10: #{tpu_custom_call.1} parent=5 // pred_check_branch
        %253 = sbr.rel (%p250) target = $region12
      $region11: #{tpu_custom_call.1} parent=5 // pred_region
        %s254 = ssub.s32 %s24, 1
        // Predicated region
        $region13: #{tpu_custom_call.1} parent=11 // pred_check
          %p255 = pneg %p87
        $region14: #{tpu_custom_call.1} parent=11 // pred_check_branch
          %257 = sbr.rel (%p255) target = $region16
        $region15: #{tpu_custom_call.1} parent=11 // pred_region
          %259 = vsyncadd [#allocation10], 0
          %s260 = sshll.u32 %s1, 4
          %s261 = int_to_ptr.hbm [resolvable:$true] %s260
          %s262 = sshll.u32 [#allocation9], 4
          %s263 = int_to_ptr.vmem [resolvable:$true] %s262
          %268 = dma.hbm_to_vmem [thread:$0]  %s261, 2048, %s263, [#allocation10], 64, 64, 4
        $region16: #{tpu_custom_call.1} parent=11 // pred_fallthru
          _
        // Predicated region
        $region17: #{tpu_custom_call.1} parent=11 // pred_check
          %p269 = pneg %p108
        $region18: #{tpu_custom_call.1} parent=11 // pred_check_branch
          %271 = sbr.rel (%p269) target = $region20
        $region19: #{tpu_custom_call.1} parent=11 // pred_region
          _
        $region20: #{tpu_custom_call.1} parent=11 // pred_fallthru
          _
        // Predicated region
        $region21: #{tpu_custom_call.1} parent=11 // pred_check
          %p272 = pneg %p129
        $region22: #{tpu_custom_call.1} parent=11 // pred_check_branch
          %274 = sbr.rel (%p272) target = $region24
        $region23: #{tpu_custom_call.1} parent=11 // pred_region
          %276 = vsyncadd [#allocation10], 0
          %s277 = sshll.u32 %s3, 4
          %s278 = int_to_ptr.hbm [resolvable:$true] %s277
          %s279 = sshll.u32 [#allocation11], 4
          %s280 = int_to_ptr.vmem [resolvable:$true] %s279
          %285 = dma.hbm_to_vmem [thread:$0]  %s278, 1024, %s280, [#allocation10], 64, 64, 4
        $region24: #{tpu_custom_call.1} parent=11 // pred_fallthru
          _
        // Predicated region
        $region25: #{tpu_custom_call.1} parent=11 // pred_check
          %p286 = pneg %p150
        $region26: #{tpu_custom_call.1} parent=11 // pred_check_branch
          %288 = sbr.rel (%p286) target = $region28
        $region27: #{tpu_custom_call.1} parent=11 // pred_region
          _
        $region28: #{tpu_custom_call.1} parent=11 // pred_fallthru
          _
      $region12: #{tpu_custom_call.1} parent=5 // pred_fallthru
        _
      %p289 = scmp.lt.s32.totalorder %s24, 3
      // Predicated region
      $region29: #{tpu_custom_call.1} parent=5 // pred_check
        %p290 = pneg %p289
      $region30: #{tpu_custom_call.1} parent=5 // pred_check_branch
        %292 = sbr.rel (%p290) target = $region32
      $region31: #{tpu_custom_call.1} parent=5 // pred_region
        // Predicated region
        $region33: #{tpu_custom_call.1} parent=31 // pred_check
          %p293 = pneg %p60
        $region34: #{tpu_custom_call.1} parent=31 // pred_check_branch
          %295 = sbr.rel (%p293) target = $region36
        $region35: #{tpu_custom_call.1} parent=31 // pred_region
          %s296 = sand.u32 %s50, 1
          %s297 = scalar_lea.sflag [#allocation7], %s296
          %s298 = sand.u32 %s50, 1
          %s299 = smul.addr %s298, 32
          %s300 = scalar_lea.vmem [#allocation6], %s299
          %s301 = smul.u32 %s31, 3
          %s302 = sadd.s32 %s301, %s32
          %s303 = smul.u32 4, %s302
          %305 = vsyncadd %s297, 0
          %s306 = smul.addr %s303, 2
          %s307 = smul.addr %s306, 4
          %s308 = scalar_lea.hbm %s0, %s307
          %s309 = sshll.u32 %s308, 4
          %s310 = int_to_ptr.hbm [resolvable:$true] %s309
          %s311 = sshll.u32 %s300, 4
          %s312 = int_to_ptr.vmem [resolvable:$true] %s311
          %317 = dma.hbm_to_vmem [thread:$0]  %s310, 512, %s312, %s297, 128, 128, 8
        $region36: #{tpu_custom_call.1} parent=31 // pred_fallthru
          _
      $region32: #{tpu_custom_call.1} parent=5 // pred_fallthru
        _
      %p318 = scmp.le.s32.totalorder 1, %s24
      %p319 = scmp.lt.s32.totalorder %s24, 4
      %p320 = pnand %p318, %p319
      %p321 = pneg %p320
      // Predicated region
      $region37: #{tpu_custom_call.1} parent=5 // pred_check
        _
      $region38: #{tpu_custom_call.1} parent=5 // pred_check_branch
        %323 = sbr.rel (%p320) target = $region40
      $region39: #{tpu_custom_call.1} parent=5 // pred_region
        %s324 = ssub.s32 %s24, 1
        %s325 = sand.u32 %s53, 1
        %s326 = scalar_lea.sflag [#allocation7], %s325
        %s327 = sand.u32 %s53, 1
        %s328 = smul.addr %s327, 32
        %s329 = scalar_lea.vmem [#allocation6], %s328
        // Predicated region
        $region41: #{tpu_custom_call.1} parent=39 // pred_check
          %p330 = pneg %p66
        $region42: #{tpu_custom_call.1} parent=39 // pred_check_branch
          %332 = sbr.rel (%p330) target = $region44
        $region43: #{tpu_custom_call.1} parent=39 // pred_region
          %334 = dma.done %s326, 512
        $region44: #{tpu_custom_call.1} parent=39 // pred_fallthru
          _
        // Predicated region
        $region45: #{tpu_custom_call.1} parent=39 // pred_check
          %p335 = pneg %p87
        $region46: #{tpu_custom_call.1} parent=39 // pred_check_branch
          %337 = sbr.rel (%p335) target = $region48
        $region47: #{tpu_custom_call.1} parent=39 // pred_region
          %339 = dma.done [#allocation10], 2048
        $region48: #{tpu_custom_call.1} parent=39 // pred_fallthru
          _
        // Predicated region
        $region49: #{tpu_custom_call.1} parent=39 // pred_check
          %p340 = pneg %p129
        $region50: #{tpu_custom_call.1} parent=39 // pred_check_branch
          %342 = sbr.rel (%p340) target = $region52
        $region51: #{tpu_custom_call.1} parent=39 // pred_region
          %344 = dma.done [#allocation10], 1024
        $region52: #{tpu_custom_call.1} parent=39 // pred_fallthru
          _
        %s345 = sand.u32 %s53, 1
        %s346 = scalar_lea.sflag [#allocation7], %s345
        %s347 = sand.u32 %s53, 1
        %s348 = smul.addr %s347, 32
        %s349 = scalar_lea.vmem [#allocation6], %s348
        %p350 = pneg %p66
        %p351 = pneg %p63
        %p352 = pneg %p87
        %p353 = pneg %p84
        %p354 = pneg %p108
        %p355 = pneg %p105
        %p356 = pneg %p129
        %p357 = pneg %p126
        %p358 = pneg %p150
        %p359 = pneg %p147
        %p360 = pneg %p180
        %p361 = pneg %p177
        %s362 = sand.u32 %s167, 1
        %s363 = scalar_lea.sflag [#allocation8], %s362
        %s364 = sand.u32 %s167, 1
        %s365 = smul.addr %s364, 16
        %s366 = scalar_lea.vmem [#allocation12], %s365
        %p367 = pneg %p210
        %p368 = pneg %p207
        %s369 = sand.u32 %s29, 1
        %s370 = scalar_lea.sflag [#allocation14], %s369
        %s371 = sand.u32 %s197, 1
        %s372 = smul.addr %s371, 16
        %s373 = scalar_lea.vmem [#allocation13], %s372
        %p374 = pneg %p240
        %p375 = pneg %p237
        %s376 = sand.u32 %s29, 1
        %s377 = scalar_lea.sflag [#allocation14], %s376
        %s378 = sand.u32 %s227, 1
        %s379 = smul.addr %s378, 32
        %s380 = scalar_lea.vmem [#allocation15], %s379
        %s381 = smul.u32 %s33, 3
        %s382 = sadd.s32 %s381, %s34
        %s383 = smul.u32 4, %s382
        %s384 = smul.u32 %s33, 3
        %s385 = sadd.s32 %s384, %s34
        %s386 = smul.u32 4, %s385
        %s387 = smul.u32 %s33, 3
        %s388 = sadd.s32 %s387, %s34
        %s389 = smul.u32 4, %s388
        %s390 = smul.u32 %s33, 3
        %s391 = sadd.s32 %s390, %s34
        %s392 = smul.u32 4, %s391
        %p393 = scmp.eq.s32.totalorder %s34, 0
        // Predicated region
        $region53: #{tpu_custom_call.1} parent=39 // pred_check
          %p394 = pneg %p393
        $region54: #{tpu_custom_call.1} parent=39 // pred_check_branch
          %396 = sbr.rel (%p394) target = $region56
        $region55: #{tpu_custom_call.1} parent=39 // pred_region
          %397 = vst [vmem:[#allocation2] sm:$0xff] 0.0
          %398 = vst [vmem:[#allocation3] sm:$0xff] 0.0
        $region56: #{tpu_custom_call.1} parent=39 // pred_fallthru
          _
        %v399 = vld [vmem:[%s329] sm:$0xff]
        %v400 = vld [vmem:[%s329 + $0x8] sm:$0xff]
        %v401 = vld [vmem:[%s329 + $0x10] sm:$0xff]
        %v402 = vld [vmem:[%s329 + $0x18] sm:$0xff]
        %v403 = vld [vmem:[#allocation9] sm:$0xf]
        %v404 = vld [vmem:[#allocation9 + $0x4] sm:$0xf]
        %v405 = vld [vmem:[#allocation9 + $0x8] sm:$0xf]
        %v406 = vld [vmem:[#allocation9 + $0xc] sm:$0xf]
        %v407 = vld [vmem:[#allocation9 + $0x10] sm:$0xf]
        %v408 = vld [vmem:[#allocation9 + $0x14] sm:$0xf]
        %v409 = vld [vmem:[#allocation9 + $0x18] sm:$0xf]
        %v410 = vld [vmem:[#allocation9 + $0x1c] sm:$0xf]
        %v411 = vld [vmem:[#allocation9 + $0x20] sm:$0xf]
        %v412 = vld [vmem:[#allocation9 + $0x24] sm:$0xf]
        %v413 = vld [vmem:[#allocation9 + $0x28] sm:$0xf]
        %v414 = vld [vmem:[#allocation9 + $0x2c] sm:$0xf]
        %v415 = vld [vmem:[#allocation9 + $0x30] sm:$0xf]
        %v416 = vld [vmem:[#allocation9 + $0x34] sm:$0xf]
        %v417 = vld [vmem:[#allocation9 + $0x38] sm:$0xf]
        %v418 = vld [vmem:[#allocation9 + $0x3c] sm:$0xf]
        %v419 = vld [vmem:[#allocation9 + $0x40] sm:$0xf]
        %v420 = vld [vmem:[#allocation9 + $0x44] sm:$0xf]
        %v421 = vld [vmem:[#allocation9 + $0x48] sm:$0xf]
        %v422 = vld [vmem:[#allocation9 + $0x4c] sm:$0xf]
        %v423 = vld [vmem:[#allocation9 + $0x50] sm:$0xf]
        %v424 = vld [vmem:[#allocation9 + $0x54] sm:$0xf]
        %v425 = vld [vmem:[#allocation9 + $0x58] sm:$0xf]
        %v426 = vld [vmem:[#allocation9 + $0x5c] sm:$0xf]
        %v427 = vld [vmem:[#allocation9 + $0x60] sm:$0xf]
        %v428 = vld [vmem:[#allocation9 + $0x64] sm:$0xf]
        %v429 = vld [vmem:[#allocation9 + $0x68] sm:$0xf]
        %v430 = vld [vmem:[#allocation9 + $0x6c] sm:$0xf]
        %v431 = vld [vmem:[#allocation9 + $0x70] sm:$0xf]
        %v432 = vld [vmem:[#allocation9 + $0x74] sm:$0xf]
        %v433 = vld [vmem:[#allocation9 + $0x78] sm:$0xf]
        %v434 = vld [vmem:[#allocation9 + $0x7c] sm:$0xf]
        %v435 = vld [vmem:[%s2] sm:$0x1]
        %v437 = vperm.slane %v435, 0
        %v443 = vunpack.c.l.b16 %v399
        %v444 = vunpack.c.h.b16 %v399
        %v445 = vunpack.c.l.b16 %v400
        %v446 = vunpack.c.h.b16 %v400
        %v447 = vunpack.c.l.b16 %v401
        %v448 = vunpack.c.h.b16 %v401
        %v449 = vunpack.c.l.b16 %v402
        %v450 = vunpack.c.h.b16 %v402
        %v451 = vpack.c.b16 %v445, %v443
        %v452 = vpack.c.b16 %v446, %v444
        %v453 = vpack.c.b16 %v449, %v447
        %v454 = vpack.c.b16 %v450, %v448
        %v491 = vunpack.c.l.b16 %v403
        %v492 = vunpack.c.l.b16 %v404
        %v493 = vunpack.c.l.b16 %v405
        %v494 = vunpack.c.l.b16 %v406
        %v495 = vunpack.c.l.b16 %v407
        %v496 = vunpack.c.l.b16 %v408
        %v497 = vunpack.c.l.b16 %v409
        %v498 = vunpack.c.l.b16 %v410
        %v499 = vunpack.c.l.b16 %v411
        %v500 = vunpack.c.l.b16 %v412
        %v501 = vunpack.c.l.b16 %v413
        %v502 = vunpack.c.l.b16 %v414
        %v503 = vunpack.c.l.b16 %v415
        %v504 = vunpack.c.l.b16 %v416
        %v505 = vunpack.c.l.b16 %v417
        %v506 = vunpack.c.l.b16 %v418
        %v507 = vunpack.c.l.b16 %v419
        %v508 = vunpack.c.l.b16 %v420
        %v509 = vunpack.c.l.b16 %v421
        %v510 = vunpack.c.l.b16 %v422
        %v511 = vunpack.c.l.b16 %v423
        %v512 = vunpack.c.l.b16 %v424
        %v513 = vunpack.c.l.b16 %v425
        %v514 = vunpack.c.l.b16 %v426
        %v515 = vunpack.c.l.b16 %v427
        %v516 = vunpack.c.l.b16 %v428
        %v517 = vunpack.c.l.b16 %v429
        %v518 = vunpack.c.l.b16 %v430
        %v519 = vunpack.c.l.b16 %v431
        %v520 = vunpack.c.l.b16 %v432
        %v521 = vunpack.c.l.b16 %v433
        %v522 = vunpack.c.l.b16 %v434
        %v523 = vpack.c.b16 %v492, %v491
        %v524 = vpack.c.b16 %v494, %v493
        %v525 = vpack.c.b16 %v496, %v495
        %v526 = vpack.c.b16 %v498, %v497
        %v527 = vpack.c.b16 %v500, %v499
        %v528 = vpack.c.b16 %v502, %v501
        %v529 = vpack.c.b16 %v504, %v503
        %v530 = vpack.c.b16 %v506, %v505
        %v531 = vpack.c.b16 %v508, %v507
        %v532 = vpack.c.b16 %v510, %v509
        %v533 = vpack.c.b16 %v512, %v511
        %v534 = vpack.c.b16 %v514, %v513
        %v535 = vpack.c.b16 %v516, %v515
        %v536 = vpack.c.b16 %v518, %v517
        %v537 = vpack.c.b16 %v520, %v519
        %v538 = vpack.c.b16 %v522, %v521
        %555 = vmatpush.bf16.msra.mxu0 %v530
        %556 = vmatpush.bf16.msra.mxu0 %v529
        %557 = vmatpush.bf16.msra.mxu0 %v528
        %558 = vmatpush.bf16.msra.mxu0 %v527
        %559 = vmatpush.bf16.msra.mxu0 %v526
        %560 = vmatpush.bf16.msra.mxu0 %v525
        %561 = vmatpush.bf16.msra.mxu0 %v524
        %562 = vmatpush.bf16.msra.mxu0 %v523
        %563 = vmatmul.bf16.gmra.mxu0 %v451
        %v564 = vpop.f32.mrf.mxu0
        %v565 = vadd.f32 %v437, %v564
        %v566 = vpop.f32.mrf.mxu0
        %v567 = vadd.f32 %v437, %v566
        %568 = vmatmul.bf16.gmra.mxu0 %v453
        %v569 = vpop.f32.mrf.mxu0
        %v570 = vadd.f32 %v437, %v569
        %v571 = vpop.f32.mrf.mxu0
        %v572 = vadd.f32 %v437, %v571
        %573 = vdwg.mxu0
        %574 = vmatpush.bf16.msra.mxu0 %v538
        %575 = vmatpush.bf16.msra.mxu0 %v537
        %576 = vmatpush.bf16.msra.mxu0 %v536
        %577 = vmatpush.bf16.msra.mxu0 %v535
        %578 = vmatpush.bf16.msra.mxu0 %v534
        %579 = vmatpush.bf16.msra.mxu0 %v533
        %580 = vmatpush.bf16.msra.mxu0 %v532
        %581 = vmatpush.bf16.msra.mxu0 %v531
        %582 = vmatmul.bf16.gmra.mxu0 %v452
        %v583 = vpop.f32.mrf.mxu0
        %v584 = vadd.f32 %v565, %v583
        %v585 = vpop.f32.mrf.mxu0
        %v586 = vadd.f32 %v567, %v585
        %587 = vmatmul.bf16.gmra.mxu0 %v454
        %v588 = vpop.f32.mrf.mxu0
        %v589 = vadd.f32 %v570, %v588
        %v590 = vpop.f32.mrf.mxu0
        %v591 = vadd.f32 %v572, %v590
        %592 = vdwg.mxu0
        %593 = vst [vmem:[#allocation4] sm:$0xff] %v584
        %594 = vst [vmem:[#allocation4 + $0x8] sm:$0xff] %v586
        %595 = vst [vmem:[#allocation4 + $0x10] sm:$0xff] %v589
        %596 = vst [vmem:[#allocation4 + $0x18] sm:$0xff] %v591
        %v597 = vld [vmem:[#allocation4] sm:$0xff]
        %v598 = vld [vmem:[#allocation2] sm:$0xff]
        %vm599 = vcmp.gt.f32.partialorder %v598, 1.0
        %v600 = vsel %vm599, 1, 0
        %v601 = vcvt.s32.f32 %v600
        %v602 = vmul.f32 %v598, 0.99
        %v603 = vadd.f32 %v602, %v597
        %v604 = vsub.f32 %v603, %v601
        %605 = vst [vmem:[#allocation2] sm:$0xff] %v604
        %vm606 = vcmp.gt.f32.partialorder %v604, 1.0
        %v607 = vsel %vm606, 1, 0
        %v608 = vcvt.s32.f32 %v607
        %609 = vst [vmem:[#allocation4] sm:$0xff] %v608
        %s610 = scalar_lea.vmem [#allocation4], 8
        %v611 = vld [vmem:[%s610] sm:$0xff]
        %v612 = vld [vmem:[#allocation2] sm:$0xff]
        %vm613 = vcmp.gt.f32.partialorder %v612, 1.0
        %v614 = vsel %vm613, 1, 0
        %v615 = vcvt.s32.f32 %v614
        %v616 = vmul.f32 %v612, 0.99
        %v617 = vadd.f32 %v616, %v611
        %v618 = vsub.f32 %v617, %v615
        %619 = vst [vmem:[#allocation2] sm:$0xff] %v618
        %vm620 = vcmp.gt.f32.partialorder %v618, 1.0
        %v621 = vsel %vm620, 1, 0
        %v622 = vcvt.s32.f32 %v621
        %623 = vst [vmem:[%s610] sm:$0xff] %v622
        %s624 = scalar_lea.vmem [#allocation4], 16
        %v625 = vld [vmem:[%s624] sm:$0xff]
        %v626 = vld [vmem:[#allocation2] sm:$0xff]
        %vm627 = vcmp.gt.f32.partialorder %v626, 1.0
        %v628 = vsel %vm627, 1, 0
        %v629 = vcvt.s32.f32 %v628
        %v630 = vmul.f32 %v626, 0.99
        %v631 = vadd.f32 %v630, %v625
        %v632 = vsub.f32 %v631, %v629
        %633 = vst [vmem:[#allocation2] sm:$0xff] %v632
        %vm634 = vcmp.gt.f32.partialorder %v632, 1.0
        %v635 = vsel %vm634, 1, 0
        %v636 = vcvt.s32.f32 %v635
        %637 = vst [vmem:[%s624] sm:$0xff] %v636
        %s638 = scalar_lea.vmem [#allocation4], 24
        %v639 = vld [vmem:[%s638] sm:$0xff]
        %v640 = vld [vmem:[#allocation2] sm:$0xff]
        %vm641 = vcmp.gt.f32.partialorder %v640, 1.0
        %v642 = vsel %vm641, 1, 0
        %v643 = vcvt.s32.f32 %v642
        %v644 = vmul.f32 %v640, 0.99
        %v645 = vadd.f32 %v644, %v639
        %v646 = vsub.f32 %v645, %v643
        %647 = vst [vmem:[#allocation2] sm:$0xff] %v646
        %vm648 = vcmp.gt.f32.partialorder %v646, 1.0
        %v649 = vsel %vm648, 1, 0
        %v650 = vcvt.s32.f32 %v649
        %651 = vst [vmem:[%s638] sm:$0xff] %v650
        %v652 = vld [vmem:[#allocation4] sm:$0xff]
        %v653 = vld [vmem:[#allocation4 + $0x8] sm:$0xff]
        %v654 = vld [vmem:[#allocation4 + $0x10] sm:$0xff]
        %v655 = vld [vmem:[#allocation4 + $0x18] sm:$0xff]
        %v656 = vpack.c.bf16 %v652, %v652
        %v657 = vpack.c.bf16 %v653, %v653
        %v658 = vpack.c.bf16 %v654, %v654
        %v659 = vpack.c.bf16 %v655, %v655
        %660 = vst [vmem:[%s366] sm:$0xf] %v656
        %661 = vst [vmem:[%s366 + $0x4] sm:$0xf] %v657
        %662 = vst [vmem:[%s366 + $0x8] sm:$0xf] %v658
        %663 = vst [vmem:[%s366 + $0xc] sm:$0xf] %v659
        %v664 = vld [vmem:[#allocation11] sm:$0xf]
        %v665 = vld [vmem:[#allocation11 + $0x4] sm:$0xf]
        %v666 = vld [vmem:[#allocation11 + $0x8] sm:$0xf]
        %v667 = vld [vmem:[#allocation11 + $0xc] sm:$0xf]
        %v668 = vld [vmem:[#allocation11 + $0x10] sm:$0xf]
        %v669 = vld [vmem:[#allocation11 + $0x14] sm:$0xf]
        %v670 = vld [vmem:[#allocation11 + $0x18] sm:$0xf]
        %v671 = vld [vmem:[#allocation11 + $0x1c] sm:$0xf]
        %v672 = vld [vmem:[#allocation11 + $0x20] sm:$0xf]
        %v673 = vld [vmem:[#allocation11 + $0x24] sm:$0xf]
        %v674 = vld [vmem:[#allocation11 + $0x28] sm:$0xf]
        %v675 = vld [vmem:[#allocation11 + $0x2c] sm:$0xf]
        %v676 = vld [vmem:[#allocation11 + $0x30] sm:$0xf]
        %v677 = vld [vmem:[#allocation11 + $0x34] sm:$0xf]
        %v678 = vld [vmem:[#allocation11 + $0x38] sm:$0xf]
        %v679 = vld [vmem:[#allocation11 + $0x3c] sm:$0xf]
        %v680 = vld [vmem:[%s4] sm:$0x1]
        %v682 = vperm.slane %v680, 0
        %v688 = vunpack.c.l.b16 %v656
        %v689 = vunpack.c.l.b16 %v657
        %v690 = vunpack.c.l.b16 %v658
        %v691 = vunpack.c.l.b16 %v659
        %v692 = vpack.c.b16 %v689, %v688
        %v693 = vpack.c.b16 %v691, %v690
        %v712 = vunpack.c.l.b16 %v664
        %v713 = vunpack.c.l.b16 %v665
        %v714 = vunpack.c.l.b16 %v666
        %v715 = vunpack.c.l.b16 %v667
        %v716 = vunpack.c.l.b16 %v668
        %v717 = vunpack.c.l.b16 %v669
        %v718 = vunpack.c.l.b16 %v670
        %v719 = vunpack.c.l.b16 %v671
        %v720 = vunpack.c.l.b16 %v672
        %v721 = vunpack.c.l.b16 %v673
        %v722 = vunpack.c.l.b16 %v674
        %v723 = vunpack.c.l.b16 %v675
        %v724 = vunpack.c.l.b16 %v676
        %v725 = vunpack.c.l.b16 %v677
        %v726 = vunpack.c.l.b16 %v678
        %v727 = vunpack.c.l.b16 %v679
        %v728 = vpack.c.b16 %v713, %v712
        %v729 = vpack.c.b16 %v715, %v714
        %v730 = vpack.c.b16 %v717, %v716
        %v731 = vpack.c.b16 %v719, %v718
        %v732 = vpack.c.b16 %v721, %v720
        %v733 = vpack.c.b16 %v723, %v722
        %v734 = vpack.c.b16 %v725, %v724
        %v735 = vpack.c.b16 %v727, %v726
        %744 = vmatpush.bf16.msra.mxu0 %v735
        %745 = vmatpush.bf16.msra.mxu0 %v734
        %746 = vmatpush.bf16.msra.mxu0 %v733
        %747 = vmatpush.bf16.msra.mxu0 %v732
        %748 = vmatpush.bf16.msra.mxu0 %v731
        %749 = vmatpush.bf16.msra.mxu0 %v730
        %750 = vmatpush.bf16.msra.mxu0 %v729
        %751 = vmatpush.bf16.msra.mxu0 %v728
        %752 = vmatmul.bf16.gmra.mxu0 %v692
        %v753 = vpop.f32.mrf.mxu0
        %v754 = vadd.f32 %v682, %v753
        %v755 = vpop.f32.mrf.mxu0
        %v756 = vadd.f32 %v682, %v755
        %757 = vmatmul.bf16.gmra.mxu0 %v693
        %v758 = vpop.f32.mrf.mxu0
        %v759 = vadd.f32 %v682, %v758
        %v760 = vpop.f32.mrf.mxu0
        %v761 = vadd.f32 %v682, %v760
        %762 = vdwg.mxu0
        %763 = vst [vmem:[#allocation5] sm:$0xff] %v754
        %764 = vst [vmem:[#allocation5 + $0x8] sm:$0xff] %v756
        %765 = vst [vmem:[#allocation5 + $0x10] sm:$0xff] %v759
        %766 = vst [vmem:[#allocation5 + $0x18] sm:$0xff] %v761
        %v767 = vld [vmem:[#allocation5] sm:$0xff]
        %v768 = vld [vmem:[#allocation3] sm:$0xff]
        %vm769 = vcmp.gt.f32.partialorder %v768, 1.0
        %v770 = vsel %vm769, 1, 0
        %v771 = vcvt.s32.f32 %v770
        %v772 = vmul.f32 %v768, 0.99
        %v773 = vadd.f32 %v772, %v767
        %v774 = vsub.f32 %v773, %v771
        %775 = vst [vmem:[#allocation3] sm:$0xff] %v774
        %776 = vst [vmem:[%s380] sm:$0xff] %v774
        %vm777 = vcmp.gt.f32.partialorder %v774, 1.0
        %v778 = vsel %vm777, 1, 0
        %v779 = vcvt.s32.f32 %v778
        %780 = vst [vmem:[#allocation5] sm:$0xff] %v779
        %s781 = scalar_lea.vmem [#allocation5], 8
        %v782 = vld [vmem:[%s781] sm:$0xff]
        %v783 = vld [vmem:[#allocation3] sm:$0xff]
        %vm784 = vcmp.gt.f32.partialorder %v783, 1.0
        %v785 = vsel %vm784, 1, 0
        %v786 = vcvt.s32.f32 %v785
        %v787 = vmul.f32 %v783, 0.99
        %v788 = vadd.f32 %v787, %v782
        %v789 = vsub.f32 %v788, %v786
        %790 = vst [vmem:[#allocation3] sm:$0xff] %v789
        %s791 = scalar_lea.vmem %s380, 8 [#allocation15]
        %792 = vst [vmem:[%s791] sm:$0xff] %v789
        %vm793 = vcmp.gt.f32.partialorder %v789, 1.0
        %v794 = vsel %vm793, 1, 0
        %v795 = vcvt.s32.f32 %v794
        %796 = vst [vmem:[%s781] sm:$0xff] %v795
        %s797 = scalar_lea.vmem [#allocation5], 16
        %v798 = vld [vmem:[%s797] sm:$0xff]
        %v799 = vld [vmem:[#allocation3] sm:$0xff]
        %vm800 = vcmp.gt.f32.partialorder %v799, 1.0
        %v801 = vsel %vm800, 1, 0
        %v802 = vcvt.s32.f32 %v801
        %v803 = vmul.f32 %v799, 0.99
        %v804 = vadd.f32 %v803, %v798
        %v805 = vsub.f32 %v804, %v802
        %806 = vst [vmem:[#allocation3] sm:$0xff] %v805
        %s807 = scalar_lea.vmem %s380, 16 [#allocation15]
        %808 = vst [vmem:[%s807] sm:$0xff] %v805
        %vm809 = vcmp.gt.f32.partialorder %v805, 1.0
        %v810 = vsel %vm809, 1, 0
        %v811 = vcvt.s32.f32 %v810
        %812 = vst [vmem:[%s797] sm:$0xff] %v811
        %s813 = scalar_lea.vmem [#allocation5], 24
        %v814 = vld [vmem:[%s813] sm:$0xff]
        %v815 = vld [vmem:[#allocation3] sm:$0xff]
        %vm816 = vcmp.gt.f32.partialorder %v815, 1.0
        %v817 = vsel %vm816, 1, 0
        %v818 = vcvt.s32.f32 %v817
        %v819 = vmul.f32 %v815, 0.99
        %v820 = vadd.f32 %v819, %v814
        %v821 = vsub.f32 %v820, %v818
        %822 = vst [vmem:[#allocation3] sm:$0xff] %v821
        %s823 = scalar_lea.vmem %s380, 24 [#allocation15]
        %824 = vst [vmem:[%s823] sm:$0xff] %v821
        %vm825 = vcmp.gt.f32.partialorder %v821, 1.0
        %v826 = vsel %vm825, 1, 0
        %v827 = vcvt.s32.f32 %v826
        %828 = vst [vmem:[%s813] sm:$0xff] %v827
        %v829 = vld [vmem:[#allocation5] sm:$0xff]
        %v830 = vld [vmem:[#allocation5 + $0x8] sm:$0xff]
        %v831 = vld [vmem:[#allocation5 + $0x10] sm:$0xff]
        %v832 = vld [vmem:[#allocation5 + $0x18] sm:$0xff]
        %v833 = vpack.c.bf16 %v829, %v829
        %v834 = vpack.c.bf16 %v830, %v830
        %v835 = vpack.c.bf16 %v831, %v831
        %v836 = vpack.c.bf16 %v832, %v832
        %837 = vst [vmem:[%s373] sm:$0xf] %v833
        %838 = vst [vmem:[%s373 + $0x4] sm:$0xf] %v834
        %839 = vst [vmem:[%s373 + $0x8] sm:$0xf] %v835
        %840 = vst [vmem:[%s373 + $0xc] sm:$0xf] %v836
        %s841 = sand.u32 %s167, 1
        %s842 = scalar_lea.sflag [#allocation8], %s841
        %s843 = sand.u32 %s167, 1
        %s844 = smul.addr %s843, 16
        %s845 = scalar_lea.vmem [#allocation12], %s844
        %s846 = sand.u32 %s29, 1
        %s847 = scalar_lea.sflag [#allocation14], %s846
        %s848 = sand.u32 %s197, 1
        %s849 = smul.addr %s848, 16
        %s850 = scalar_lea.vmem [#allocation13], %s849
        %s851 = sand.u32 %s29, 1
        %s852 = scalar_lea.sflag [#allocation14], %s851
        %s853 = sand.u32 %s227, 1
        %s854 = smul.addr %s853, 32
        %s855 = scalar_lea.vmem [#allocation15], %s854
        // Predicated region
        $region57: #{tpu_custom_call.1} parent=39 // pred_check
          %p856 = pneg %p177
        $region58: #{tpu_custom_call.1} parent=39 // pred_check_branch
          %858 = sbr.rel (%p856) target = $region60
        $region59: #{tpu_custom_call.1} parent=39 // pred_region
          %s859 = smul.u32 %s33, 3
          %s860 = sadd.s32 %s859, %s34
          %s861 = smul.u32 4, %s860
          %863 = vsyncadd %s842, 0
          %s864 = smul.addr %s861, 4
          %s865 = scalar_lea.hbm %s5, %s864
          %s866 = sshll.u32 %s845, 4
          %s867 = int_to_ptr.vmem [resolvable:$true] %s866
          %s868 = sshll.u32 %s865, 4
          %s869 = int_to_ptr.hbm [resolvable:$true] %s868
          %874 = dma.vmem_to_hbm [thread:$0]  %s867, 256, %s869, %s842, 64, 64, 4
        $region60: #{tpu_custom_call.1} parent=39 // pred_fallthru
          _
        // Predicated region
        $region61: #{tpu_custom_call.1} parent=39 // pred_check
          %p875 = pneg %p207
        $region62: #{tpu_custom_call.1} parent=39 // pred_check_branch
          %877 = sbr.rel (%p875) target = $region64
        $region63: #{tpu_custom_call.1} parent=39 // pred_region
          %s878 = smul.u32 %s33, 3
          %s879 = sadd.s32 %s878, %s34
          %s880 = smul.u32 4, %s879
          %882 = vsyncadd %s847, 0
          %s883 = smul.addr %s880, 4
          %s884 = scalar_lea.hbm %s6, %s883
          %s885 = sshll.u32 %s850, 4
          %s886 = int_to_ptr.vmem [resolvable:$true] %s885
          %s887 = sshll.u32 %s884, 4
          %s888 = int_to_ptr.hbm [resolvable:$true] %s887
          %893 = dma.vmem_to_hbm [thread:$0]  %s886, 256, %s888, %s847, 64, 64, 4
        $region64: #{tpu_custom_call.1} parent=39 // pred_fallthru
          _
        // Predicated region
        $region65: #{tpu_custom_call.1} parent=39 // pred_check
          %p894 = pneg %p237
        $region66: #{tpu_custom_call.1} parent=39 // pred_check_branch
          %896 = sbr.rel (%p894) target = $region68
        $region67: #{tpu_custom_call.1} parent=39 // pred_region
          %s897 = smul.u32 %s33, 3
          %s898 = sadd.s32 %s897, %s34
          %s899 = smul.u32 4, %s898
          %901 = vsyncadd %s852, 0
          %s902 = smul.addr %s899, 8
          %s903 = scalar_lea.hbm %s7, %s902
          %s904 = sshll.u32 %s855, 4
          %s905 = int_to_ptr.vmem [resolvable:$true] %s904
          %s906 = sshll.u32 %s903, 4
          %s907 = int_to_ptr.hbm [resolvable:$true] %s906
          %912 = dma.vmem_to_hbm [thread:$0]  %s905, 512, %s907, %s852, 128, 128, 8
        $region68: #{tpu_custom_call.1} parent=39 // pred_fallthru
          _
      $region40: #{tpu_custom_call.1} parent=5 // pred_fallthru
        _
      %p913 = scmp.le.s32.totalorder 2, %s24
      // Predicated region
      $region69: #{tpu_custom_call.1} parent=5 // pred_check
        %p914 = pneg %p913
      $region70: #{tpu_custom_call.1} parent=5 // pred_check_branch
        %916 = sbr.rel (%p914) target = $region72
      $region71: #{tpu_custom_call.1} parent=5 // pred_region
        %s917 = ssub.s32 %s24, 2
        // Predicated region
        $region73: #{tpu_custom_call.1} parent=71 // pred_check
          %p918 = pneg %p183
        $region74: #{tpu_custom_call.1} parent=71 // pred_check_branch
          %920 = sbr.rel (%p918) target = $region76
        $region75: #{tpu_custom_call.1} parent=71 // pred_region
          %s921 = sand.u32 %s168, 1
          %s922 = scalar_lea.sflag [#allocation8], %s921
          %s923 = sand.u32 %s168, 1
          %s924 = smul.addr %s923, 16
          %s925 = scalar_lea.vmem [#allocation12], %s924
          %927 = dma.done %s922, 256
        $region76: #{tpu_custom_call.1} parent=71 // pred_fallthru
          _
        // Predicated region
        $region77: #{tpu_custom_call.1} parent=71 // pred_check
          %p928 = pneg %p213
        $region78: #{tpu_custom_call.1} parent=71 // pred_check_branch
          %930 = sbr.rel (%p928) target = $region80
        $region79: #{tpu_custom_call.1} parent=71 // pred_region
          %s931 = sand.u32 %s30, 1
          %s932 = scalar_lea.sflag [#allocation14], %s931
          %s933 = sand.u32 %s198, 1
          %s934 = smul.addr %s933, 16
          %s935 = scalar_lea.vmem [#allocation13], %s934
          %937 = dma.done %s932, 256
        $region80: #{tpu_custom_call.1} parent=71 // pred_fallthru
          _
        // Predicated region
        $region81: #{tpu_custom_call.1} parent=71 // pred_check
          %p938 = pneg %p243
        $region82: #{tpu_custom_call.1} parent=71 // pred_check_branch
          %940 = sbr.rel (%p938) target = $region84
        $region83: #{tpu_custom_call.1} parent=71 // pred_region
          %s941 = sand.u32 %s30, 1
          %s942 = scalar_lea.sflag [#allocation14], %s941
          %s943 = sand.u32 %s228, 1
          %s944 = smul.addr %s943, 32
          %s945 = scalar_lea.vmem [#allocation15], %s944
          %947 = dma.done %s942, 512
        $region84: #{tpu_custom_call.1} parent=71 // pred_fallthru
          _
      $region72: #{tpu_custom_call.1} parent=5 // pred_fallthru
        _
    $region6: #{tpu_custom_call.1} parent=1 // loop_footer
      %s28 = sadd.s32 1, %s24
    $region7: #{tpu_custom_call.1} parent=1 // loop_footer_branch
      %23 = sbr.rel target = $region3
    $region8: #{tpu_custom_call.1} parent=1 // loop_exit
      _
    %948 = vsyncpa [#allocation7], 1
    %s949 = scalar_lea.sflag [#allocation7], 1
    %950 = vsyncpa %s949, 1
    %951 = vsyncpa [#allocation10], 1
    %952 = vsyncpa [#allocation8], 1
    %s953 = scalar_lea.sflag [#allocation8], 1
    %954 = vsyncpa %s953, 1
    %955 = vsyncpa [#allocation14], 1
    %s956 = scalar_lea.sflag [#allocation14], 1
    %957 = vsyncpa %s956, 1

</llo_original>
